<compile_context>
chip_gen: v7x
topology: tpu7x:2x2x1
jax: 0.10.0
libtpu: 0.0.40
codegen_flags: <defaults>
</compile_context>

<pallas_src>
import numpy as np
import jax
import jax.numpy as jnp
from jax.experimental import pallas as pl
from jax.experimental.pallas import tpu as pltpu


# ----------------------------- fused Pallas kernel -----------------------------

def convnet_fused_kernel(
    x_ref,        # (R, W*Cin)     lane-dense input view, R = N*H
    a_ref,        # (3, W*Cin, W*C) banded 3x3 conv matrices (one per kh)
    bconv_ref,    # (1, W*C)       conv bias, tiled along W
    gamma_ref,    # (1, W*C)       BN gamma, tiled along W
    beta_ref,     # (1, W*C)       BN beta, tiled along W
    d_ref,        # (3, W*C, W*C)  banded depthwise 3x3 matrices
    p_ref,        # (W*C, W*C)     block-diagonal 1x1 pointwise matrix
    b5_ref,       # (1, W*C)       fused depthwise+pointwise bias
    cw_ref,       # (W*C, U)       even-w selector @ (w_dense / (Ho*Wo))
    bh_ref,       # (1, U)         dense-head bias
    s_ref,        # (2, R, R)      constant row-shift matrices: [0] -> h-1, [1] -> h+1
    g_ref,        # (W*C, W*C)     per-channel averaging (lane -> lane), scaled 1/(N*H*W)
    tlane_ref,    # (W*C, W*C)     constant lane shift by +C (next w column)
    rowsel_ref,   # (N, R)         even-h row selector per image
    out_ref,      # (N, U)
):
    f32 = jnp.float32
    dot = lambda a, b: jnp.dot(a, b, preferred_element_type=f32)

    x = x_ref[...]
    s_m1 = s_ref[0]          # reads row h-1 (zero at h == 0, image boundaries respected)
    s_p1 = s_ref[1]          # reads row h+1 (zero at h == H-1)

    # ---- layer 2: 3x3 conv (Cin -> C), padding 1, as three lane-dense banded matmuls
    y2 = (dot(dot(s_m1, x), a_ref[0])
          + dot(x, a_ref[1])
          + dot(dot(s_p1, x), a_ref[2])) + bconv_ref[...]

    # ---- layers 3 + 4: train-mode batchnorm (single pass) fused with ReLU
    s1 = jnp.sum(y2, axis=0, keepdims=True)              # (1, W*C)
    s2 = jnp.sum(y2 * y2, axis=0, keepdims=True)
    mean = dot(s1, g_ref[...])                           # per-channel mean, lane layout
    ex2 = dot(s2, g_ref[...])
    var = ex2 - mean * mean                              # biased batch variance
    scale = gamma_ref[...] * jax.lax.rsqrt(var + 1e-5)
    shift = beta_ref[...] - mean * scale
    y4 = jnp.maximum(y2 * scale + shift, 0.0)

    # ---- layer 5: depthwise-separable conv (3x3 depthwise + 1x1 pointwise)
    dw = (dot(dot(s_m1, y4), d_ref[0])
          + dot(y4, d_ref[1])
          + dot(dot(s_p1, y4), d_ref[2]))
    y5 = dot(dw, p_ref[...]) + b5_ref[...]

    # ---- layer 6: merge (add)
    y6 = y4 + y5

    # ---- layers 7 + 8: 2x2 max-pool, global average pool, Linear head
    rmax = jnp.maximum(y6, dot(s_p1, y6))                # pair rows (h, h+1)
    pmax = jnp.maximum(rmax, dot(rmax, tlane_ref[...]))  # pair columns (w, w+1)
    pooled = dot(rowsel_ref[...], pmax)                  # (N, W*C): sum over even h
    out_ref[...] = dot(pooled, cw_ref[...]) + bh_ref[...]


# ----------------------------- trace-time weight repacking -----------------------------

def _band_indicator(W, KW):
    """ind[kw, wi, wo] = 1 iff wi == wo + kw - (KW-1)//2 (and 0 <= wi < W)."""
    pad = (KW - 1) // 2
    ind = np.zeros((KW, W, W), np.float32)
    for kw in range(KW):
        for wo in range(W):
            wi = wo + kw - pad
            if 0 <= wi < W:
                ind[kw, wi, wo] = 1.0
    return ind


def _band_matrices(w_hwio, W):
    """Repack HWIO conv weights (KH,KW,Cin,Cout) into per-kh lane-dense band matrices
    of shape (KH, W*Cin, W*Cout) acting on (N*H, W*Cin) activations ('same' padding)."""
    KH, KW, Cin, Cout = w_hwio.shape
    ind = jnp.asarray(_band_indicator(W, KW))
    m = jnp.einsum("hkio,kab->haibo", w_hwio, ind)       # (KH, W, Cin, W, Cout)
    return m.reshape(KH, W * Cin, W * Cout)


def _shift_matrix(N, H, dh):
    """S[r, q] = 1 iff q = r + dh within the same image (zero rows at image edges)."""
    R = N * H
    s = np.zeros((R, R), np.float32)
    for n in range(N):
        for h in range(H):
            hs = h + dh
            if 0 <= hs < H:
                s[n * H + h, n * H + hs] = 1.0
    return s


# ----------------------------- wrapper -----------------------------

def init_params(key):
    ks = jax.random.split(key, 8)
    C_IN, C_MID, UNITS = 4, 8, 10

    def u(k, shape, fan_in):
        bound = 1.0 / np.sqrt(fan_in)
        return jax.random.uniform(k, shape, jnp.float32, -bound, bound)

    return dict(
        w_conv=u(ks[0], (3, 3, C_IN, C_MID), C_IN * 9),    # layer 2 (HWIO)
        b_conv=u(ks[1], (1, C_MID), C_IN * 9),
        bn_gamma=jnp.ones((1, C_MID), jnp.float32),        # layer 3
        bn_beta=jnp.zeros((1, C_MID), jnp.float32),
        w_dw=u(ks[2], (3, 3, 1, C_MID), 9),                # layer 5 depthwise
        b_dw=u(ks[3], (1, C_MID), 9),
        w_pw=u(ks[4], (1, 1, C_MID, C_MID), C_MID),        # layer 5 pointwise
        b_pw=u(ks[5], (1, C_MID), C_MID),
        w_dense=u(ks[6], (C_MID, UNITS), C_MID),           # layer 8 (in, out)
        b_dense=u(ks[7], (1, UNITS), C_MID),
    )


@jax.jit
def convnet_forward(x_nchw, params):
    x = jnp.transpose(x_nchw, (0, 2, 3, 1)).astype(jnp.float32)   # NCHW -> NHWC
    N, H, W, Cin = x.shape
    C = params["w_conv"].shape[-1]
    U = params["w_dense"].shape[-1]
    Ho, Wo = H // 2, W // 2
    R = N * H
    WC = W * C
    f32 = jnp.float32

    # lane-dense input view: (N*H, W*Cin); the last dim maps to the 128 lanes.
    x_ld = x.reshape(R, W * Cin)

    # --- weight repacking (tiny XLA ops, run once per call ahead of the kernel)
    a_band = _band_matrices(params["w_conv"], W)                    # (3, W*Cin, WC)
    eye_c = jnp.eye(C, dtype=f32)
    w_dw_full = params["w_dw"][:, :, 0, :, None] * eye_c            # (3,3,C,C) diagonal
    d_band = _band_matrices(w_dw_full, W)                           # (3, WC, WC)
    p_mat = _band_matrices(params["w_pw"], W)[0]                    # (WC, WC)

    tile_row = lambda b: jnp.tile(b, (1, W))                        # (1,C) -> (1,WC)
    bconv_row = tile_row(params["b_conv"])
    gamma_row = tile_row(params["bn_gamma"])
    beta_row = tile_row(params["bn_beta"])
    b5_row = tile_row(params["b_dw"]) @ p_mat + tile_row(params["b_pw"])

    # --- constant 0/1 shift / reduce / select matrices (exact, trace-time numpy)
    s_shift = jnp.asarray(np.stack([_shift_matrix(N, H, -1),
                                    _shift_matrix(N, H, +1)]))      # (2, R, R)

    g_np = np.kron(np.ones((W, W), np.float32), np.eye(C, dtype=np.float32))
    g_mat = jnp.asarray(g_np / float(N * H * W))                    # per-channel mean

    tlane_np = np.zeros((WC, WC), np.float32)
    for w in range(W - 1):
        tlane_np[(w + 1) * C:(w + 2) * C, w * C:(w + 1) * C] = np.eye(C, dtype=np.float32)
    tlane = jnp.asarray(tlane_np)

    rowsel_np = np.zeros((N, R), np.float32)
    for n in range(N):
        rowsel_np[n, n * H:(n + 1) * H:2] = 1.0
    rowsel = jnp.asarray(rowsel_np)

    colsel_np = np.zeros((WC, C), np.float32)
    for w in range(0, W, 2):
        colsel_np[w * C:(w + 1) * C, :] = np.eye(C, dtype=np.float32)
    cw = jnp.asarray(colsel_np) @ (params["w_dense"] / float(Ho * Wo))   # (WC, U)

    args = (x_ld, a_band, bconv_row, gamma_row, beta_row,
            d_band, p_mat, b5_row, cw, params["b_dense"],
            s_shift, g_mat, tlane, rowsel)

    vmem = pl.BlockSpec(memory_space=pltpu.MemorySpace.VMEM)
    return pl.pallas_call(
        convnet_fused_kernel,
        out_shape=jax.ShapeDtypeStruct((N, U), f32),
        in_specs=[vmem] * len(args),
        out_specs=vmem,
    )(*args)


def convnet_reference(x_nchw, params):
    """Pure-JAX reference of the same graph (for correctness check)."""
    x = jnp.transpose(x_nchw, (0, 2, 3, 1)).astype(jnp.float32)
    dn = ("NHWC", "HWIO", "NHWC")
    y2 = jax.lax.conv_general_dilated(x, params["w_conv"], (1, 1), "SAME",
                                      dimension_numbers=dn) + params["b_conv"][0]
    mean = jnp.mean(y2, axis=(0, 1, 2))
    var = jnp.mean((y2 - mean) ** 2, axis=(0, 1, 2))
    y3 = (y2 - mean) * jax.lax.rsqrt(var + 1e-5) * params["bn_gamma"][0] + params["bn_beta"][0]
    y4 = jnp.maximum(y3, 0.0)
    C = y4.shape[-1]
    dw = jax.lax.conv_general_dilated(y4, params["w_dw"], (1, 1), "SAME",
                                      dimension_numbers=dn,
                                      feature_group_count=C) + params["b_dw"][0]
    y5 = jax.lax.conv_general_dilated(dw, params["w_pw"], (1, 1), "SAME",
                                      dimension_numbers=dn) + params["b_pw"][0]
    y6 = y4 + y5
    y7 = jax.lax.reduce_window(y6, -jnp.inf, jax.lax.max,
                               (1, 2, 2, 1), (1, 2, 2, 1), "VALID")
    pooled = jnp.mean(y7, axis=(1, 2))
    return pooled @ params["w_dense"] + params["b_dense"][0]


if __name__ == "__main__":
    key = jax.random.PRNGKey(0)
    kx, kp = jax.random.split(key)
    x = jax.random.normal(kx, (2, 4, 16, 16), jnp.float32)   # NCHW, like PyTorch
    params = init_params(kp)

    out = convnet_forward(x, params)
    out = jax.block_until_ready(out)
    assert out.shape == (2, 10) and bool(jnp.all(jnp.isfinite(out)))

    ref = convnet_reference(x, params)
    np.testing.assert_allclose(np.asarray(out), np.asarray(ref), rtol=5e-2, atol=5e-2)

    print("KERNEL_OK")
</pallas_src>

<mosaic_0001>
module attributes {stable_mosaic.version = 11 : i64} {
  func.func @convnet_fused_kernel(%arg0: memref<32x64xf32, #tpu.memory_space<vmem>>, %arg1: memref<3x64x128xf32, #tpu.memory_space<vmem>>, %arg2: memref<1x128xf32, #tpu.memory_space<vmem>>, %arg3: memref<1x128xf32, #tpu.memory_space<vmem>>, %arg4: memref<1x128xf32, #tpu.memory_space<vmem>>, %arg5: memref<3x128x128xf32, #tpu.memory_space<vmem>>, %arg6: memref<128x128xf32, #tpu.memory_space<vmem>>, %arg7: memref<1x128xf32, #tpu.memory_space<vmem>>, %arg8: memref<128x10xf32, #tpu.memory_space<vmem>>, %arg9: memref<1x10xf32, #tpu.memory_space<vmem>>, %arg10: memref<2x32x32xf32, #tpu.memory_space<vmem>>, %arg11: memref<128x128xf32, #tpu.memory_space<vmem>>, %arg12: memref<128x128xf32, #tpu.memory_space<vmem>>, %arg13: memref<2x32xf32, #tpu.memory_space<vmem>>, %arg14: memref<2x10xf32, #tpu.memory_space<vmem>>) attributes {dimension_semantics = [], scalar_prefetch = 0 : i64, scratch_operands = 0 : i64, tpu.core_type = #tpu.core_type<tc>} {
    %c0 = arith.constant 0 : index
    %c0_0 = arith.constant 0 : index
    %0 = vector.load %arg0[%c0, %c0_0] : memref<32x64xf32, #tpu.memory_space<vmem>>, vector<32x64xf32>
    %c0_1 = arith.constant 0 : index
    %c0_2 = arith.constant 0 : index
    %c0_3 = arith.constant 0 : index
    %1 = vector.load %arg10[%c0_1, %c0_2, %c0_3] : memref<2x32x32xf32, #tpu.memory_space<vmem>>, vector<1x32x32xf32>
    %2 = vector.shape_cast %1 : vector<1x32x32xf32> to vector<32x32xf32>
    %c1 = arith.constant 1 : index
    %c0_4 = arith.constant 0 : index
    %c0_5 = arith.constant 0 : index
    %3 = vector.load %arg10[%c1, %c0_4, %c0_5] : memref<2x32x32xf32, #tpu.memory_space<vmem>>, vector<1x32x32xf32>
    %4 = vector.shape_cast %3 : vector<1x32x32xf32> to vector<32x32xf32>
    %cst = arith.constant dense<0.000000e+00> : vector<32x64xf32>
    %5 = tpu.matmul %2, %0, %cst {dimension_numbers = #tpu.dot_dimension_numbers<[1], [0], [0], [1], [0, 0, 1, 1], [], []>} : vector<32x32xf32>, vector<32x64xf32>, vector<32x64xf32> -> vector<32x64xf32>
    %c0_6 = arith.constant 0 : index
    %c0_7 = arith.constant 0 : index
    %c0_8 = arith.constant 0 : index
    %6 = vector.load %arg1[%c0_6, %c0_7, %c0_8] : memref<3x64x128xf32, #tpu.memory_space<vmem>>, vector<1x64x128xf32>
    %7 = vector.shape_cast %6 : vector<1x64x128xf32> to vector<64x128xf32>
    %cst_9 = arith.constant dense<0.000000e+00> : vector<32x128xf32>
    %8 = tpu.matmul %5, %7, %cst_9 {dimension_numbers = #tpu.dot_dimension_numbers<[1], [0], [0], [1], [0, 0, 1, 1], [], []>} : vector<32x64xf32>, vector<64x128xf32>, vector<32x128xf32> -> vector<32x128xf32>
    %c1_10 = arith.constant 1 : index
    %c0_11 = arith.constant 0 : index
    %c0_12 = arith.constant 0 : index
    %9 = vector.load %arg1[%c1_10, %c0_11, %c0_12] : memref<3x64x128xf32, #tpu.memory_space<vmem>>, vector<1x64x128xf32>
    %10 = vector.shape_cast %9 : vector<1x64x128xf32> to vector<64x128xf32>
    %cst_13 = arith.constant dense<0.000000e+00> : vector<32x128xf32>
    %11 = tpu.matmul %0, %10, %cst_13 {dimension_numbers = #tpu.dot_dimension_numbers<[1], [0], [0], [1], [0, 0, 1, 1], [], []>} : vector<32x64xf32>, vector<64x128xf32>, vector<32x128xf32> -> vector<32x128xf32>
    %12 = arith.addf %8, %11 : vector<32x128xf32>
    %cst_14 = arith.constant dense<0.000000e+00> : vector<32x64xf32>
    %13 = tpu.matmul %4, %0, %cst_14 {dimension_numbers = #tpu.dot_dimension_numbers<[1], [0], [0], [1], [0, 0, 1, 1], [], []>} : vector<32x32xf32>, vector<32x64xf32>, vector<32x64xf32> -> vector<32x64xf32>
    %c2 = arith.constant 2 : index
    %c0_15 = arith.constant 0 : index
    %c0_16 = arith.constant 0 : index
    %14 = vector.load %arg1[%c2, %c0_15, %c0_16] : memref<3x64x128xf32, #tpu.memory_space<vmem>>, vector<1x64x128xf32>
    %15 = vector.shape_cast %14 : vector<1x64x128xf32> to vector<64x128xf32>
    %cst_17 = arith.constant dense<0.000000e+00> : vector<32x128xf32>
    %16 = tpu.matmul %13, %15, %cst_17 {dimension_numbers = #tpu.dot_dimension_numbers<[1], [0], [0], [1], [0, 0, 1, 1], [], []>} : vector<32x64xf32>, vector<64x128xf32>, vector<32x128xf32> -> vector<32x128xf32>
    %17 = arith.addf %12, %16 : vector<32x128xf32>
    %c0_18 = arith.constant 0 : index
    %c0_19 = arith.constant 0 : index
    %18 = vector.load %arg2[%c0_18, %c0_19] : memref<1x128xf32, #tpu.memory_space<vmem>>, vector<1x128xf32>
    %19 = vector.broadcast %18 : vector<1x128xf32> to vector<32x128xf32>
    %20 = arith.addf %17, %19 : vector<32x128xf32>
    %cst_20 = arith.constant dense<0.000000e+00> : vector<128xf32>
    %21 = vector.multi_reduction <add>, %20, %cst_20 [0] : vector<32x128xf32> to vector<128xf32>
    %22 = vector.shape_cast %21 : vector<128xf32> to vector<1x128xf32>
    %23 = arith.mulf %20, %20 : vector<32x128xf32>
    %cst_21 = arith.constant dense<0.000000e+00> : vector<128xf32>
    %24 = vector.multi_reduction <add>, %23, %cst_21 [0] : vector<32x128xf32> to vector<128xf32>
    %25 = vector.shape_cast %24 : vector<128xf32> to vector<1x128xf32>
    %c0_22 = arith.constant 0 : index
    %c0_23 = arith.constant 0 : index
    %26 = vector.load %arg11[%c0_22, %c0_23] : memref<128x128xf32, #tpu.memory_space<vmem>>, vector<128x128xf32>
    %cst_24 = arith.constant dense<0.000000e+00> : vector<1x128xf32>
    %27 = tpu.matmul %22, %26, %cst_24 {dimension_numbers = #tpu.dot_dimension_numbers<[1], [0], [0], [1], [0, 0, 1, 1], [], []>} : vector<1x128xf32>, vector<128x128xf32>, vector<1x128xf32> -> vector<1x128xf32>
    %c0_25 = arith.constant 0 : index
    %c0_26 = arith.constant 0 : index
    %28 = vector.load %arg11[%c0_25, %c0_26] : memref<128x128xf32, #tpu.memory_space<vmem>>, vector<128x128xf32>
    %cst_27 = arith.constant dense<0.000000e+00> : vector<1x128xf32>
    %29 = tpu.matmul %25, %28, %cst_27 {dimension_numbers = #tpu.dot_dimension_numbers<[1], [0], [0], [1], [0, 0, 1, 1], [], []>} : vector<1x128xf32>, vector<128x128xf32>, vector<1x128xf32> -> vector<1x128xf32>
    %30 = arith.mulf %27, %27 : vector<1x128xf32>
    %31 = arith.subf %29, %30 : vector<1x128xf32>
    %c0_28 = arith.constant 0 : index
    %c0_29 = arith.constant 0 : index
    %32 = vector.load %arg3[%c0_28, %c0_29] : memref<1x128xf32, #tpu.memory_space<vmem>>, vector<1x128xf32>
    %cst_30 = arith.constant 9.99999974E-6 : f32
    %33 = vector.broadcast %cst_30 : f32 to vector<1x128xf32>
    %34 = arith.addf %31, %33 : vector<1x128xf32>
    %35 = math.rsqrt %34 : vector<1x128xf32>
    %36 = arith.mulf %32, %35 : vector<1x128xf32>
    %c0_31 = arith.constant 0 : index
    %c0_32 = arith.constant 0 : index
    %37 = vector.load %arg4[%c0_31, %c0_32] : memref<1x128xf32, #tpu.memory_space<vmem>>, vector<1x128xf32>
    %38 = arith.mulf %27, %36 : vector<1x128xf32>
    %39 = arith.subf %37, %38 : vector<1x128xf32>
    %40 = vector.broadcast %36 : vector<1x128xf32> to vector<32x128xf32>
    %41 = arith.mulf %20, %40 : vector<32x128xf32>
    %42 = vector.broadcast %39 : vector<1x128xf32> to vector<32x128xf32>
    %43 = arith.addf %41, %42 : vector<32x128xf32>
    %cst_33 = arith.constant 0.000000e+00 : f32
    %44 = vector.broadcast %cst_33 : f32 to vector<32x128xf32>
    %45 = arith.maximumf %43, %44 : vector<32x128xf32>
    %cst_34 = arith.constant dense<0.000000e+00> : vector<32x128xf32>
    %46 = tpu.matmul %2, %45, %cst_34 {dimension_numbers = #tpu.dot_dimension_numbers<[1], [0], [0], [1], [0, 0, 1, 1], [], []>} : vector<32x32xf32>, vector<32x128xf32>, vector<32x128xf32> -> vector<32x128xf32>
    %c0_35 = arith.constant 0 : index
    %c0_36 = arith.constant 0 : index
    %c0_37 = arith.constant 0 : index
    %47 = vector.load %arg5[%c0_35, %c0_36, %c0_37] : memref<3x128x128xf32, #tpu.memory_space<vmem>>, vector<1x128x128xf32>
    %48 = vector.shape_cast %47 : vector<1x128x128xf32> to vector<128x128xf32>
    %cst_38 = arith.constant dense<0.000000e+00> : vector<32x128xf32>
    %49 = tpu.matmul %46, %48, %cst_38 {dimension_numbers = #tpu.dot_dimension_numbers<[1], [0], [0], [1], [0, 0, 1, 1], [], []>} : vector<32x128xf32>, vector<128x128xf32>, vector<32x128xf32> -> vector<32x128xf32>
    %c1_39 = arith.constant 1 : index
    %c0_40 = arith.constant 0 : index
    %c0_41 = arith.constant 0 : index
    %50 = vector.load %arg5[%c1_39, %c0_40, %c0_41] : memref<3x128x128xf32, #tpu.memory_space<vmem>>, vector<1x128x128xf32>
    %51 = vector.shape_cast %50 : vector<1x128x128xf32> to vector<128x128xf32>
    %cst_42 = arith.constant dense<0.000000e+00> : vector<32x128xf32>
    %52 = tpu.matmul %45, %51, %cst_42 {dimension_numbers = #tpu.dot_dimension_numbers<[1], [0], [0], [1], [0, 0, 1, 1], [], []>} : vector<32x128xf32>, vector<128x128xf32>, vector<32x128xf32> -> vector<32x128xf32>
    %53 = arith.addf %49, %52 : vector<32x128xf32>
    %cst_43 = arith.constant dense<0.000000e+00> : vector<32x128xf32>
    %54 = tpu.matmul %4, %45, %cst_43 {dimension_numbers = #tpu.dot_dimension_numbers<[1], [0], [0], [1], [0, 0, 1, 1], [], []>} : vector<32x32xf32>, vector<32x128xf32>, vector<32x128xf32> -> vector<32x128xf32>
    %c2_44 = arith.constant 2 : index
    %c0_45 = arith.constant 0 : index
    %c0_46 = arith.constant 0 : index
    %55 = vector.load %arg5[%c2_44, %c0_45, %c0_46] : memref<3x128x128xf32, #tpu.memory_space<vmem>>, vector<1x128x128xf32>
    %56 = vector.shape_cast %55 : vector<1x128x128xf32> to vector<128x128xf32>
    %cst_47 = arith.constant dense<0.000000e+00> : vector<32x128xf32>
    %57 = tpu.matmul %54, %56, %cst_47 {dimension_numbers = #tpu.dot_dimension_numbers<[1], [0], [0], [1], [0, 0, 1, 1], [], []>} : vector<32x128xf32>, vector<128x128xf32>, vector<32x128xf32> -> vector<32x128xf32>
    %58 = arith.addf %53, %57 : vector<32x128xf32>
    %c0_48 = arith.constant 0 : index
    %c0_49 = arith.constant 0 : index
    %59 = vector.load %arg6[%c0_48, %c0_49] : memref<128x128xf32, #tpu.memory_space<vmem>>, vector<128x128xf32>
    %cst_50 = arith.constant dense<0.000000e+00> : vector<32x128xf32>
    %60 = tpu.matmul %58, %59, %cst_50 {dimension_numbers = #tpu.dot_dimension_numbers<[1], [0], [0], [1], [0, 0, 1, 1], [], []>} : vector<32x128xf32>, vector<128x128xf32>, vector<32x128xf32> -> vector<32x128xf32>
    %c0_51 = arith.constant 0 : index
    %c0_52 = arith.constant 0 : index
    %61 = vector.load %arg7[%c0_51, %c0_52] : memref<1x128xf32, #tpu.memory_space<vmem>>, vector<1x128xf32>
    %62 = vector.broadcast %61 : vector<1x128xf32> to vector<32x128xf32>
    %63 = arith.addf %60, %62 : vector<32x128xf32>
    %64 = arith.addf %45, %63 : vector<32x128xf32>
    %cst_53 = arith.constant dense<0.000000e+00> : vector<32x128xf32>
    %65 = tpu.matmul %4, %64, %cst_53 {dimension_numbers = #tpu.dot_dimension_numbers<[1], [0], [0], [1], [0, 0, 1, 1], [], []>} : vector<32x32xf32>, vector<32x128xf32>, vector<32x128xf32> -> vector<32x128xf32>
    %66 = arith.maximumf %64, %65 : vector<32x128xf32>
    %c0_54 = arith.constant 0 : index
    %c0_55 = arith.constant 0 : index
    %67 = vector.load %arg12[%c0_54, %c0_55] : memref<128x128xf32, #tpu.memory_space<vmem>>, vector<128x128xf32>
    %cst_56 = arith.constant dense<0.000000e+00> : vector<32x128xf32>
    %68 = tpu.matmul %66, %67, %cst_56 {dimension_numbers = #tpu.dot_dimension_numbers<[1], [0], [0], [1], [0, 0, 1, 1], [], []>} : vector<32x128xf32>, vector<128x128xf32>, vector<32x128xf32> -> vector<32x128xf32>
    %69 = arith.maximumf %66, %68 : vector<32x128xf32>
    %c0_57 = arith.constant 0 : index
    %c0_58 = arith.constant 0 : index
    %70 = vector.load %arg13[%c0_57, %c0_58] : memref<2x32xf32, #tpu.memory_space<vmem>>, vector<2x32xf32>
    %cst_59 = arith.constant dense<0.000000e+00> : vector<2x128xf32>
    %71 = tpu.matmul %70, %69, %cst_59 {dimension_numbers = #tpu.dot_dimension_numbers<[1], [0], [0], [1], [0, 0, 1, 1], [], []>} : vector<2x32xf32>, vector<32x128xf32>, vector<2x128xf32> -> vector<2x128xf32>
    %c0_60 = arith.constant 0 : index
    %c0_61 = arith.constant 0 : index
    %72 = vector.load %arg8[%c0_60, %c0_61] : memref<128x10xf32, #tpu.memory_space<vmem>>, vector<128x10xf32>
    %cst_62 = arith.constant dense<0.000000e+00> : vector<2x10xf32>
    %73 = tpu.matmul %71, %72, %cst_62 {dimension_numbers = #tpu.dot_dimension_numbers<[1], [0], [0], [1], [0, 0, 1, 1], [], []>} : vector<2x128xf32>, vector<128x10xf32>, vector<2x10xf32> -> vector<2x10xf32>
    %c0_63 = arith.constant 0 : index
    %c0_64 = arith.constant 0 : index
    %74 = vector.load %arg9[%c0_63, %c0_64] : memref<1x10xf32, #tpu.memory_space<vmem>>, vector<1x10xf32>
    %75 = vector.broadcast %74 : vector<1x10xf32> to vector<2x10xf32>
    %76 = arith.addf %73, %75 : vector<2x10xf32>
    %c0_65 = arith.constant 0 : index
    %c0_66 = arith.constant 0 : index
    %77 = vector.load %arg14[%c0_65, %c0_66] : memref<2x10xf32, #tpu.memory_space<vmem>>, vector<2x10xf32>
    tpu.vector_store %arg14[%c0_65, %c0_66], %76 {strides = array<i32>} : memref<2x10xf32, #tpu.memory_space<vmem>>, vector<2x10xf32>,
    return
  }
}

</mosaic_0001>

<llo_original>
// kernel: convnet_forward.1
$region0: #{convnet_forward.1}
  #allocation0 [shape = 'u32[]', space=smem, size = 0x4, offset = 0x4, fixed_abs, tag = 'smem constant byte address 0x4 - core index']
  #allocation1 [shape = 'u32[144,128]{1,0:T(1,128)}', space=vmem, size = 0x12000, scoped, tag = 'internal scratch']
  %s0 = inlined_call_operand.vmem [shape: f32[32,64], index: 0, kind: input, shape index: {}]
  %s1 = inlined_call_operand.vmem [shape: f32[3,64,128], index: 1, kind: input, shape index: {}]
  %s2 = inlined_call_operand.vmem [shape: f32[1,128], index: 2, kind: input, shape index: {}]
  %s3 = inlined_call_operand.vmem [shape: f32[1,128], index: 3, kind: input, shape index: {}]
  %s4 = inlined_call_operand.vmem [shape: f32[1,128], index: 4, kind: input, shape index: {}]
  %s5 = inlined_call_operand.vmem [shape: f32[3,128,128], index: 5, kind: input, shape index: {}]
  %s6 = inlined_call_operand.vmem [shape: f32[128,128], index: 6, kind: input, shape index: {}]
  %s7 = inlined_call_operand.vmem [shape: f32[1,128], index: 7, kind: input, shape index: {}]
  %s8 = inlined_call_operand.vmem [shape: f32[128,10], index: 8, kind: input, shape index: {}]
  %s9 = inlined_call_operand.vmem [shape: f32[1,10], index: 9, kind: input, shape index: {}]
  %s10 = inlined_call_operand.vmem [shape: f32[2,32,32], index: 10, kind: input, shape index: {}]
  %s11 = inlined_call_operand.vmem [shape: f32[128,128], index: 11, kind: input, shape index: {}]
  %s12 = inlined_call_operand.vmem [shape: f32[128,128], index: 12, kind: input, shape index: {}]
  %s13 = inlined_call_operand.vmem [shape: f32[2,32], index: 13, kind: input, shape index: {}]
  %s14 = inlined_call_operand.hbm [shape: f32[2,10], index: 14, kind: output, shape index: {}]
  %s15 = sld [smem:[#allocation0]]
  $region66: #{convnet_forward.1} parent=0
    _
  %s17 = ssub.s32 1, %s15
  %s18 = scalar_select 0, %s17, %s15
  $region1: #{convnet_forward.1} parent=0
    #allocation2 [shape = 'u8[1024]{0}', space=vmem, size = 0x400, scoped, tag = 'output window, operand 0, single buffered']
    #allocation3 [shape = 's32[1]{0}', space=sflag, size = 0x4, scoped, tag = 'scoped memory for convnet_forward.1']
    %19 = vsyncpa [#allocation3], 0
    // Predicated region
    $region2: #{convnet_forward.1} parent=1 // pred_check
      _
    $region3: #{convnet_forward.1} parent=1 // pred_check_branch
      %21 = sbr.rel (0) target = $region5
    $region4: #{convnet_forward.1} parent=1 // pred_region
      _
    $region5: #{convnet_forward.1} parent=1 // pred_fallthru
      _
    // Predicated region
    $region6: #{convnet_forward.1} parent=1 // pred_check
      _
    $region7: #{convnet_forward.1} parent=1 // pred_check_branch
      %23 = sbr.rel (0) target = $region9
    $region8: #{convnet_forward.1} parent=1 // pred_region
      _
    $region9: #{convnet_forward.1} parent=1 // pred_fallthru
      _
    // Predicated region
    $region10: #{convnet_forward.1} parent=1 // pred_check
      _
    $region11: #{convnet_forward.1} parent=1 // pred_check_branch
      %25 = sbr.rel (0) target = $region13
    $region12: #{convnet_forward.1} parent=1 // pred_region
      _
    $region13: #{convnet_forward.1} parent=1 // pred_fallthru
      _
    // Predicated region
    $region14: #{convnet_forward.1} parent=1 // pred_check
      _
    $region15: #{convnet_forward.1} parent=1 // pred_check_branch
      %27 = sbr.rel (0) target = $region17
    $region16: #{convnet_forward.1} parent=1 // pred_region
      _
    $region17: #{convnet_forward.1} parent=1 // pred_fallthru
      _
    // Predicated region
    $region18: #{convnet_forward.1} parent=1 // pred_check
      _
    $region19: #{convnet_forward.1} parent=1 // pred_check_branch
      %29 = sbr.rel (0) target = $region21
    $region20: #{convnet_forward.1} parent=1 // pred_region
      _
    $region21: #{convnet_forward.1} parent=1 // pred_fallthru
      _
    // Predicated region
    $region22: #{convnet_forward.1} parent=1 // pred_check
      _
    $region23: #{convnet_forward.1} parent=1 // pred_check_branch
      %31 = sbr.rel (0) target = $region25
    $region24: #{convnet_forward.1} parent=1 // pred_region
      _
    $region25: #{convnet_forward.1} parent=1 // pred_fallthru
      _
    // Predicated region
    $region26: #{convnet_forward.1} parent=1 // pred_check
      _
    $region27: #{convnet_forward.1} parent=1 // pred_check_branch
      %33 = sbr.rel (0) target = $region29
    $region28: #{convnet_forward.1} parent=1 // pred_region
      _
    $region29: #{convnet_forward.1} parent=1 // pred_fallthru
      _
    // Predicated region
    $region30: #{convnet_forward.1} parent=1 // pred_check
      _
    $region31: #{convnet_forward.1} parent=1 // pred_check_branch
      %35 = sbr.rel (0) target = $region33
    $region32: #{convnet_forward.1} parent=1 // pred_region
      _
    $region33: #{convnet_forward.1} parent=1 // pred_fallthru
      _
    // Predicated region
    $region34: #{convnet_forward.1} parent=1 // pred_check
      _
    $region35: #{convnet_forward.1} parent=1 // pred_check_branch
      %37 = sbr.rel (0) target = $region37
    $region36: #{convnet_forward.1} parent=1 // pred_region
      _
    $region37: #{convnet_forward.1} parent=1 // pred_fallthru
      _
    // Predicated region
    $region38: #{convnet_forward.1} parent=1 // pred_check
      _
    $region39: #{convnet_forward.1} parent=1 // pred_check_branch
      %39 = sbr.rel (0) target = $region41
    $region40: #{convnet_forward.1} parent=1 // pred_region
      _
    $region41: #{convnet_forward.1} parent=1 // pred_fallthru
      _
    // Predicated region
    $region42: #{convnet_forward.1} parent=1 // pred_check
      _
    $region43: #{convnet_forward.1} parent=1 // pred_check_branch
      %41 = sbr.rel (0) target = $region45
    $region44: #{convnet_forward.1} parent=1 // pred_region
      _
    $region45: #{convnet_forward.1} parent=1 // pred_fallthru
      _
    // Predicated region
    $region46: #{convnet_forward.1} parent=1 // pred_check
      _
    $region47: #{convnet_forward.1} parent=1 // pred_check_branch
      %43 = sbr.rel (0) target = $region49
    $region48: #{convnet_forward.1} parent=1 // pred_region
      _
    $region49: #{convnet_forward.1} parent=1 // pred_fallthru
      _
    // Predicated region
    $region50: #{convnet_forward.1} parent=1 // pred_check
      _
    $region51: #{convnet_forward.1} parent=1 // pred_check_branch
      %45 = sbr.rel (0) target = $region53
    $region52: #{convnet_forward.1} parent=1 // pred_region
      _
    $region53: #{convnet_forward.1} parent=1 // pred_fallthru
      _
    // Predicated region
    $region54: #{convnet_forward.1} parent=1 // pred_check
      _
    $region55: #{convnet_forward.1} parent=1 // pred_check_branch
      %47 = sbr.rel (0) target = $region57
    $region56: #{convnet_forward.1} parent=1 // pred_region
      _
    $region57: #{convnet_forward.1} parent=1 // pred_fallthru
      _
    %v48 = vld [vmem:[%s0] sm:$0xff]
    %v49 = vld [vmem:[%s0 + $0x8] sm:$0xff]
    %v50 = vld [vmem:[%s0 + $0x10] sm:$0xff]
    %v51 = vld [vmem:[%s0 + $0x18] sm:$0xff]
    %v52 = vld [vmem:[%s10] sm:$0xff]
    %v53 = vld [vmem:[%s10 + $0x8] sm:$0xff]
    %v54 = vld [vmem:[%s10 + $0x10] sm:$0xff]
    %v55 = vld [vmem:[%s10 + $0x18] sm:$0xff]
    %s56 = scalar_lea.vmem %s10, 32
    %v57 = vld [vmem:[%s56] sm:$0xff]
    %v58 = vld [vmem:[%s56 + $0x8] sm:$0xff]
    %v59 = vld [vmem:[%s56 + $0x10] sm:$0xff]
    %v60 = vld [vmem:[%s56 + $0x18] sm:$0xff]
    %vm61 = vcmask 261120
    %v63 = vsel %vm61, %v52, 0
    %v66 = vsel %vm61, %v53, 0
    %v69 = vsel %vm61, %v54, 0
    %v72 = vsel %vm61, %v55, 0
    %74 = vmatprep.subr.mxu0 0.0
    %75 = vmatpush1.msra.mxu0 %v48
    %76 = vmatprep.subr.mxu0 0.0
    %77 = vmatpush1.msra.mxu0 %v49
    %78 = vmatprep.subr.mxu0 0.0
    %79 = vmatpush1.msra.mxu0 %v50
    %80 = vmatprep.subr.mxu0 0.0
    %81 = vmatpush1.msra.mxu0 %v51
    %82 = vmatprep.subr.mxu0 0.0
    %83 = vmatpush1.msra.mxu0 0.0
    %84 = vmatprep.subr.mxu0 0.0
    %85 = vmatpush1.msra.mxu0 0.0
    %86 = vmatprep.subr.mxu0 0.0
    %87 = vmatpush1.msra.mxu0 0.0
    %88 = vmatprep.subr.mxu0 0.0
    %89 = vmatpush1.msra.mxu0 0.0
    %90 = vmatprep.subr.mxu0 0.0
    %91 = vmatpush1.msra.mxu0 0.0
    %92 = vmatprep.subr.mxu0 0.0
    %93 = vmatpush1.msra.mxu0 0.0
    %94 = vmatprep.subr.mxu0 0.0
    %95 = vmatpush1.msra.mxu0 0.0
    %96 = vmatprep.subr.mxu0 0.0
    %97 = vmatpush1.msra.mxu0 0.0
    %98 = vmatprep.subr.mxu0 0.0
    %99 = vmatpush1.msra.mxu0 0.0
    %100 = vmatprep.subr.mxu0 0.0
    %101 = vmatpush1.msra.mxu0 0.0
    %102 = vmatprep.subr.mxu0 0.0
    %103 = vmatpush1.msra.mxu0 0.0
    %104 = vmatprep.subr.mxu0 0.0
    %105 = vmatpush1.msra.mxu0 0.0
    %106 = vmatprep.subr.mxu0 0.0
    %107 = vmatpush1.msra.mxu0 0.0
    %108 = vmatprep.subr.mxu0 0.0
    %109 = vmatpush1.msra.mxu0 0.0
    %110 = vmatprep.subr.mxu0 0.0
    %111 = vmatpush1.msra.mxu0 0.0
    %112 = vmatprep.subr.mxu0 0.0
    %113 = vmatpush1.msra.mxu0 0.0
    %114 = vmatprep.subr.mxu0 0.0
    %115 = vmatpush1.msra.mxu0 0.0
    %116 = vmatprep.subr.mxu0 0.0
    %117 = vmatpush1.msra.mxu0 0.0
    %118 = vmatprep.subr.mxu0 0.0
    %119 = vmatpush1.msra.mxu0 0.0
    %120 = vmatprep.subr.mxu0 0.0
    %121 = vmatpush1.msra.mxu0 0.0
    %122 = vmatprep.subr.mxu0 0.0
    %123 = vmatpush1.msra.mxu0 0.0
    %124 = vmatprep.subr.mxu0 0.0
    %125 = vmatpush1.msra.mxu0 0.0
    %126 = vmatprep.subr.mxu0 0.0
    %127 = vmatpush1.msra.mxu0 0.0
    %128 = vmatprep.subr.mxu0 0.0
    %129 = vmatpush1.msra.mxu0 0.0
    %130 = vmatprep.subr.mxu0 0.0
    %131 = vmatpush1.msra.mxu0 0.0
    %132 = vmatprep.subr.mxu0 0.0
    %133 = vmatpush1.msra.mxu0 0.0
    %134 = vmatprep.subr.mxu0 0.0
    %135 = vmatpush1.msra.mxu0 0.0
    %136 = vmatprep.subr.mxu0 0.0
    %137 = vmatpush1.msra.mxu0 0.0
    %138 = vmatprep.mubr.f32.mxu0 0.0
    %139 = vmatmul.mubr.f32.gmra.mrb[0].mxu0 %v63
    %v140 = vpop.f32.mrb[0].mxu0
    %v141 = vadd.f32 0.0, %v140
    %v142 = vpop.f32.mrb[0].mxu0
    %143 = vmatprep.mubr.f32.mxu0 0.0
    %144 = vmatmul.mubr.f32.gmra.mrb[0].mxu0 %v66
    %v145 = vpop.f32.mrb[0].mxu0
    %v146 = vadd.f32 0.0, %v145
    %v147 = vpop.f32.mrb[0].mxu0
    %148 = vmatprep.mubr.f32.mxu0 0.0
    %149 = vmatmul.mubr.f32.gmra.mrb[0].mxu0 %v69
    %v150 = vpop.f32.mrb[0].mxu0
    %v151 = vadd.f32 0.0, %v150
    %v152 = vpop.f32.mrb[0].mxu0
    %153 = vmatprep.mubr.f32.mxu0 0.0
    %154 = vmatmul.mubr.f32.gmra.mrb[0].mxu0 %v72
    %v155 = vpop.f32.mrb[0].mxu0
    %v156 = vadd.f32 0.0, %v155
    %v157 = vpop.f32.mrb[0].mxu0
    %158 = vdwg.mxu0
    %v159 = vld [vmem:[%s1] sm:$0xff]
    %v160 = vld [vmem:[%s1 + $0x8] sm:$0xff]
    %v161 = vld [vmem:[%s1 + $0x10] sm:$0xff]
    %v162 = vld [vmem:[%s1 + $0x18] sm:$0xff]
    %v163 = vld [vmem:[%s1 + $0x20] sm:$0xff]
    %v164 = vld [vmem:[%s1 + $0x28] sm:$0xff]
    %v165 = vld [vmem:[%s1 + $0x30] sm:$0xff]
    %v166 = vld [vmem:[%s1 + $0x38] sm:$0xff]
    %s167 = scalar_lea.vmem %s1, 64
    %v168 = vld [vmem:[%s167] sm:$0xff]
    %v169 = vld [vmem:[%s167 + $0x8] sm:$0xff]
    %v170 = vld [vmem:[%s167 + $0x10] sm:$0xff]
    %v171 = vld [vmem:[%s167 + $0x18] sm:$0xff]
    %v172 = vld [vmem:[%s167 + $0x20] sm:$0xff]
    %v173 = vld [vmem:[%s167 + $0x28] sm:$0xff]
    %v174 = vld [vmem:[%s167 + $0x30] sm:$0xff]
    %v175 = vld [vmem:[%s167 + $0x38] sm:$0xff]
    %vm176 = vcmask 523264
    %v178 = vsel %vm176, %v48, 0
    %v181 = vsel %vm176, %v49, 0
    %v184 = vsel %vm176, %v50, 0
    %v187 = vsel %vm176, %v51, 0
    %189 = vmatprep.subr.mxu0 0.0
    %190 = vmatpush1.msra.mxu0 %v168
    %191 = vmatprep.subr.mxu0 0.0
    %192 = vmatpush1.msra.mxu0 %v169
    %193 = vmatprep.subr.mxu0 0.0
    %194 = vmatpush1.msra.mxu0 %v170
    %195 = vmatprep.subr.mxu0 0.0
    %196 = vmatpush1.msra.mxu0 %v171
    %197 = vmatprep.subr.mxu0 0.0
    %198 = vmatpush1.msra.mxu0 %v172
    %199 = vmatprep.subr.mxu0 0.0
    %200 = vmatpush1.msra.mxu0 %v173
    %201 = vmatprep.subr.mxu0 0.0
    %202 = vmatpush1.msra.mxu0 %v174
    %203 = vmatprep.subr.mxu0 0.0
    %204 = vmatpush1.msra.mxu0 %v175
    %205 = vmatprep.subr.mxu0 0.0
    %206 = vmatpush1.msra.mxu0 0.0
    %207 = vmatprep.subr.mxu0 0.0
    %208 = vmatpush1.msra.mxu0 0.0
    %209 = vmatprep.subr.mxu0 0.0
    %210 = vmatpush1.msra.mxu0 0.0
    %211 = vmatprep.subr.mxu0 0.0
    %212 = vmatpush1.msra.mxu0 0.0
    %213 = vmatprep.subr.mxu0 0.0
    %214 = vmatpush1.msra.mxu0 0.0
    %215 = vmatprep.subr.mxu0 0.0
    %216 = vmatpush1.msra.mxu0 0.0
    %217 = vmatprep.subr.mxu0 0.0
    %218 = vmatpush1.msra.mxu0 0.0
    %219 = vmatprep.subr.mxu0 0.0
    %220 = vmatpush1.msra.mxu0 0.0
    %221 = vmatprep.subr.mxu0 0.0
    %222 = vmatpush1.msra.mxu0 0.0
    %223 = vmatprep.subr.mxu0 0.0
    %224 = vmatpush1.msra.mxu0 0.0
    %225 = vmatprep.subr.mxu0 0.0
    %226 = vmatpush1.msra.mxu0 0.0
    %227 = vmatprep.subr.mxu0 0.0
    %228 = vmatpush1.msra.mxu0 0.0
    %229 = vmatprep.subr.mxu0 0.0
    %230 = vmatpush1.msra.mxu0 0.0
    %231 = vmatprep.subr.mxu0 0.0
    %232 = vmatpush1.msra.mxu0 0.0
    %233 = vmatprep.subr.mxu0 0.0
    %234 = vmatpush1.msra.mxu0 0.0
    %235 = vmatprep.subr.mxu0 0.0
    %236 = vmatpush1.msra.mxu0 0.0
    %237 = vmatprep.subr.mxu0 0.0
    %238 = vmatpush1.msra.mxu0 0.0
    %239 = vmatprep.subr.mxu0 0.0
    %240 = vmatpush1.msra.mxu0 0.0
    %241 = vmatprep.subr.mxu0 0.0
    %242 = vmatpush1.msra.mxu0 0.0
    %243 = vmatprep.subr.mxu0 0.0
    %244 = vmatpush1.msra.mxu0 0.0
    %245 = vmatprep.subr.mxu0 0.0
    %246 = vmatpush1.msra.mxu0 0.0
    %247 = vmatprep.subr.mxu0 0.0
    %248 = vmatpush1.msra.mxu0 0.0
    %249 = vmatprep.subr.mxu0 0.0
    %250 = vmatpush1.msra.mxu0 0.0
    %251 = vmatprep.subr.mxu0 0.0
    %252 = vmatpush1.msra.mxu0 0.0
    %253 = vmatprep.mubr.f32.mxu0 0.0
    %254 = vmatmul.mubr.f32.gmra.mrb[0].mxu0 %v178
    %v255 = vpop.f32.mrb[0].mxu0
    %v256 = vadd.f32 0.0, %v255
    %v257 = vpop.f32.mrb[0].mxu0
    %258 = vmatprep.mubr.f32.mxu0 0.0
    %259 = vmatmul.mubr.f32.gmra.mrb[0].mxu0 %v181
    %v260 = vpop.f32.mrb[0].mxu0
    %v261 = vadd.f32 0.0, %v260
    %v262 = vpop.f32.mrb[0].mxu0
    %263 = vmatprep.mubr.f32.mxu0 0.0
    %264 = vmatmul.mubr.f32.gmra.mrb[0].mxu0 %v184
    %v265 = vpop.f32.mrb[0].mxu0
    %v266 = vadd.f32 0.0, %v265
    %v267 = vpop.f32.mrb[0].mxu0
    %268 = vmatprep.mubr.f32.mxu0 0.0
    %269 = vmatmul.mubr.f32.gmra.mrb[0].mxu0 %v187
    %v270 = vpop.f32.mrb[0].mxu0
    %v271 = vadd.f32 0.0, %v270
    %v272 = vpop.f32.mrb[0].mxu0
    %273 = vdwg.mxu0
    %v275 = vsel %vm176, %v141, 0
    %v278 = vsel %vm176, %v146, 0
    %v281 = vsel %vm176, %v151, 0
    %v284 = vsel %vm176, %v156, 0
    %286 = vmatprep.subr.mxu0 0.0
    %287 = vmatpush1.msra.mxu0 %v159
    %288 = vmatprep.subr.mxu0 0.0
    %289 = vmatpush1.msra.mxu0 %v160
    %290 = vmatprep.subr.mxu0 0.0
    %291 = vmatpush1.msra.mxu0 %v161
    %292 = vmatprep.subr.mxu0 0.0
    %293 = vmatpush1.msra.mxu0 %v162
    %294 = vmatprep.subr.mxu0 0.0
    %295 = vmatpush1.msra.mxu0 %v163
    %296 = vmatprep.subr.mxu0 0.0
    %297 = vmatpush1.msra.mxu0 %v164
    %298 = vmatprep.subr.mxu0 0.0
    %299 = vmatpush1.msra.mxu0 %v165
    %300 = vmatprep.subr.mxu0 0.0
    %301 = vmatpush1.msra.mxu0 %v166
    %302 = vmatprep.subr.mxu0 0.0
    %303 = vmatpush1.msra.mxu0 0.0
    %304 = vmatprep.subr.mxu0 0.0
    %305 = vmatpush1.msra.mxu0 0.0
    %306 = vmatprep.subr.mxu0 0.0
    %307 = vmatpush1.msra.mxu0 0.0
    %308 = vmatprep.subr.mxu0 0.0
    %309 = vmatpush1.msra.mxu0 0.0
    %310 = vmatprep.subr.mxu0 0.0
    %311 = vmatpush1.msra.mxu0 0.0
    %312 = vmatprep.subr.mxu0 0.0
    %313 = vmatpush1.msra.mxu0 0.0
    %314 = vmatprep.subr.mxu0 0.0
    %315 = vmatpush1.msra.mxu0 0.0
    %316 = vmatprep.subr.mxu0 0.0
    %317 = vmatpush1.msra.mxu0 0.0
    %318 = vmatprep.subr.mxu0 0.0
    %319 = vmatpush1.msra.mxu0 0.0
    %320 = vmatprep.subr.mxu0 0.0
    %321 = vmatpush1.msra.mxu0 0.0
    %322 = vmatprep.subr.mxu0 0.0
    %323 = vmatpush1.msra.mxu0 0.0
    %324 = vmatprep.subr.mxu0 0.0
    %325 = vmatpush1.msra.mxu0 0.0
    %326 = vmatprep.subr.mxu0 0.0
    %327 = vmatpush1.msra.mxu0 0.0
    %328 = vmatprep.subr.mxu0 0.0
    %329 = vmatpush1.msra.mxu0 0.0
    %330 = vmatprep.subr.mxu0 0.0
    %331 = vmatpush1.msra.mxu0 0.0
    %332 = vmatprep.subr.mxu0 0.0
    %333 = vmatpush1.msra.mxu0 0.0
    %334 = vmatprep.subr.mxu0 0.0
    %335 = vmatpush1.msra.mxu0 0.0
    %336 = vmatprep.subr.mxu0 0.0
    %337 = vmatpush1.msra.mxu0 0.0
    %338 = vmatprep.subr.mxu0 0.0
    %339 = vmatpush1.msra.mxu0 0.0
    %340 = vmatprep.subr.mxu0 0.0
    %341 = vmatpush1.msra.mxu0 0.0
    %342 = vmatprep.subr.mxu0 0.0
    %343 = vmatpush1.msra.mxu0 0.0
    %344 = vmatprep.subr.mxu0 0.0
    %345 = vmatpush1.msra.mxu0 0.0
    %346 = vmatprep.subr.mxu0 0.0
    %347 = vmatpush1.msra.mxu0 0.0
    %348 = vmatprep.subr.mxu0 0.0
    %349 = vmatpush1.msra.mxu0 0.0
    %350 = vmatprep.mubr.f32.mxu0 0.0
    %351 = vmatmul.mubr.f32.gmra.mrb[0].mxu0 %v275
    %v352 = vpop.f32.mrb[0].mxu0
    %v353 = vadd.f32 %v256, %v352
    %v354 = vpop.f32.mrb[0].mxu0
    %355 = vmatprep.mubr.f32.mxu0 0.0
    %356 = vmatmul.mubr.f32.gmra.mrb[0].mxu0 %v278
    %v357 = vpop.f32.mrb[0].mxu0
    %v358 = vadd.f32 %v261, %v357
    %v359 = vpop.f32.mrb[0].mxu0
    %360 = vmatprep.mubr.f32.mxu0 0.0
    %361 = vmatmul.mubr.f32.gmra.mrb[0].mxu0 %v281
    %v362 = vpop.f32.mrb[0].mxu0
    %v363 = vadd.f32 %v266, %v362
    %v364 = vpop.f32.mrb[0].mxu0
    %365 = vmatprep.mubr.f32.mxu0 0.0
    %366 = vmatmul.mubr.f32.gmra.mrb[0].mxu0 %v284
    %v367 = vpop.f32.mrb[0].mxu0
    %v368 = vadd.f32 %v271, %v367
    %v369 = vpop.f32.mrb[0].mxu0
    %370 = vdwg.mxu0
    %v372 = vsel %vm61, %v57, 0
    %v375 = vsel %vm61, %v58, 0
    %v378 = vsel %vm61, %v59, 0
    %v381 = vsel %vm61, %v60, 0
    %383 = vmatprep.subr.mxu0 0.0
    %384 = vmatpush1.msra.mxu0 %v48
    %385 = vmatprep.subr.mxu0 0.0
    %386 = vmatpush1.msra.mxu0 %v49
    %387 = vmatprep.subr.mxu0 0.0
    %388 = vmatpush1.msra.mxu0 %v50
    %389 = vmatprep.subr.mxu0 0.0
    %390 = vmatpush1.msra.mxu0 %v51
    %391 = vmatprep.subr.mxu0 0.0
    %392 = vmatpush1.msra.mxu0 0.0
    %393 = vmatprep.subr.mxu0 0.0
    %394 = vmatpush1.msra.mxu0 0.0
    %395 = vmatprep.subr.mxu0 0.0
    %396 = vmatpush1.msra.mxu0 0.0
    %397 = vmatprep.subr.mxu0 0.0
    %398 = vmatpush1.msra.mxu0 0.0
    %399 = vmatprep.subr.mxu0 0.0
    %400 = vmatpush1.msra.mxu0 0.0
    %401 = vmatprep.subr.mxu0 0.0
    %402 = vmatpush1.msra.mxu0 0.0
    %403 = vmatprep.subr.mxu0 0.0
    %404 = vmatpush1.msra.mxu0 0.0
    %405 = vmatprep.subr.mxu0 0.0
    %406 = vmatpush1.msra.mxu0 0.0
    %407 = vmatprep.subr.mxu0 0.0
    %408 = vmatpush1.msra.mxu0 0.0
    %409 = vmatprep.subr.mxu0 0.0
    %410 = vmatpush1.msra.mxu0 0.0
    %411 = vmatprep.subr.mxu0 0.0
    %412 = vmatpush1.msra.mxu0 0.0
    %413 = vmatprep.subr.mxu0 0.0
    %414 = vmatpush1.msra.mxu0 0.0
    %415 = vmatprep.subr.mxu0 0.0
    %416 = vmatpush1.msra.mxu0 0.0
    %417 = vmatprep.subr.mxu0 0.0
    %418 = vmatpush1.msra.mxu0 0.0
    %419 = vmatprep.subr.mxu0 0.0
    %420 = vmatpush1.msra.mxu0 0.0
    %421 = vmatprep.subr.mxu0 0.0
    %422 = vmatpush1.msra.mxu0 0.0
    %423 = vmatprep.subr.mxu0 0.0
    %424 = vmatpush1.msra.mxu0 0.0
    %425 = vmatprep.subr.mxu0 0.0
    %426 = vmatpush1.msra.mxu0 0.0
    %427 = vmatprep.subr.mxu0 0.0
    %428 = vmatpush1.msra.mxu0 0.0
    %429 = vmatprep.subr.mxu0 0.0
    %430 = vmatpush1.msra.mxu0 0.0
    %431 = vmatprep.subr.mxu0 0.0
    %432 = vmatpush1.msra.mxu0 0.0
    %433 = vmatprep.subr.mxu0 0.0
    %434 = vmatpush1.msra.mxu0 0.0
    %435 = vmatprep.subr.mxu0 0.0
    %436 = vmatpush1.msra.mxu0 0.0
    %437 = vmatprep.subr.mxu0 0.0
    %438 = vmatpush1.msra.mxu0 0.0
    %439 = vmatprep.subr.mxu0 0.0
    %440 = vmatpush1.msra.mxu0 0.0
    %441 = vmatprep.subr.mxu0 0.0
    %442 = vmatpush1.msra.mxu0 0.0
    %443 = vmatprep.subr.mxu0 0.0
    %444 = vmatpush1.msra.mxu0 0.0
    %445 = vmatprep.subr.mxu0 0.0
    %446 = vmatpush1.msra.mxu0 0.0
    %447 = vmatprep.mubr.f32.mxu0 0.0
    %448 = vmatmul.mubr.f32.gmra.mrb[0].mxu0 %v372
    %v449 = vpop.f32.mrb[0].mxu0
    %v450 = vadd.f32 0.0, %v449
    %v451 = vpop.f32.mrb[0].mxu0
    %452 = vmatprep.mubr.f32.mxu0 0.0
    %453 = vmatmul.mubr.f32.gmra.mrb[0].mxu0 %v375
    %v454 = vpop.f32.mrb[0].mxu0
    %v455 = vadd.f32 0.0, %v454
    %v456 = vpop.f32.mrb[0].mxu0
    %457 = vmatprep.mubr.f32.mxu0 0.0
    %458 = vmatmul.mubr.f32.gmra.mrb[0].mxu0 %v378
    %v459 = vpop.f32.mrb[0].mxu0
    %v460 = vadd.f32 0.0, %v459
    %v461 = vpop.f32.mrb[0].mxu0
    %462 = vmatprep.mubr.f32.mxu0 0.0
    %463 = vmatmul.mubr.f32.gmra.mrb[0].mxu0 %v381
    %v464 = vpop.f32.mrb[0].mxu0
    %v465 = vadd.f32 0.0, %v464
    %v466 = vpop.f32.mrb[0].mxu0
    %467 = vdwg.mxu0
    %s468 = scalar_lea.vmem %s1, 128
    %v469 = vld [vmem:[%s468] sm:$0xff]
    %v470 = vld [vmem:[%s468 + $0x8] sm:$0xff]
    %v471 = vld [vmem:[%s468 + $0x10] sm:$0xff]
    %v472 = vld [vmem:[%s468 + $0x18] sm:$0xff]
    %v473 = vld [vmem:[%s468 + $0x20] sm:$0xff]
    %v474 = vld [vmem:[%s468 + $0x28] sm:$0xff]
    %v475 = vld [vmem:[%s468 + $0x30] sm:$0xff]
    %v476 = vld [vmem:[%s468 + $0x38] sm:$0xff]
    %v478 = vsel %vm176, %v450, 0
    %v481 = vsel %vm176, %v455, 0
    %v484 = vsel %vm176, %v460, 0
    %v487 = vsel %vm176, %v465, 0
    %489 = vmatprep.subr.mxu0 0.0
    %490 = vmatpush1.msra.mxu0 %v469
    %491 = vmatprep.subr.mxu0 0.0
    %492 = vmatpush1.msra.mxu0 %v470
    %493 = vmatprep.subr.mxu0 0.0
    %494 = vmatpush1.msra.mxu0 %v471
    %495 = vmatprep.subr.mxu0 0.0
    %496 = vmatpush1.msra.mxu0 %v472
    %497 = vmatprep.subr.mxu0 0.0
    %498 = vmatpush1.msra.mxu0 %v473
    %499 = vmatprep.subr.mxu0 0.0
    %500 = vmatpush1.msra.mxu0 %v474
    %501 = vmatprep.subr.mxu0 0.0
    %502 = vmatpush1.msra.mxu0 %v475
    %503 = vmatprep.subr.mxu0 0.0
    %504 = vmatpush1.msra.mxu0 %v476
    %505 = vmatprep.subr.mxu0 0.0
    %506 = vmatpush1.msra.mxu0 0.0
    %507 = vmatprep.subr.mxu0 0.0
    %508 = vmatpush1.msra.mxu0 0.0
    %509 = vmatprep.subr.mxu0 0.0
    %510 = vmatpush1.msra.mxu0 0.0
    %511 = vmatprep.subr.mxu0 0.0
    %512 = vmatpush1.msra.mxu0 0.0
    %513 = vmatprep.subr.mxu0 0.0
    %514 = vmatpush1.msra.mxu0 0.0
    %515 = vmatprep.subr.mxu0 0.0
    %516 = vmatpush1.msra.mxu0 0.0
    %517 = vmatprep.subr.mxu0 0.0
    %518 = vmatpush1.msra.mxu0 0.0
    %519 = vmatprep.subr.mxu0 0.0
    %520 = vmatpush1.msra.mxu0 0.0
    %521 = vmatprep.subr.mxu0 0.0
    %522 = vmatpush1.msra.mxu0 0.0
    %523 = vmatprep.subr.mxu0 0.0
    %524 = vmatpush1.msra.mxu0 0.0
    %525 = vmatprep.subr.mxu0 0.0
    %526 = vmatpush1.msra.mxu0 0.0
    %527 = vmatprep.subr.mxu0 0.0
    %528 = vmatpush1.msra.mxu0 0.0
    %529 = vmatprep.subr.mxu0 0.0
    %530 = vmatpush1.msra.mxu0 0.0
    %531 = vmatprep.subr.mxu0 0.0
    %532 = vmatpush1.msra.mxu0 0.0
    %533 = vmatprep.subr.mxu0 0.0
    %534 = vmatpush1.msra.mxu0 0.0
    %535 = vmatprep.subr.mxu0 0.0
    %536 = vmatpush1.msra.mxu0 0.0
    %537 = vmatprep.subr.mxu0 0.0
    %538 = vmatpush1.msra.mxu0 0.0
    %539 = vmatprep.subr.mxu0 0.0
    %540 = vmatpush1.msra.mxu0 0.0
    %541 = vmatprep.subr.mxu0 0.0
    %542 = vmatpush1.msra.mxu0 0.0
    %543 = vmatprep.subr.mxu0 0.0
    %544 = vmatpush1.msra.mxu0 0.0
    %545 = vmatprep.subr.mxu0 0.0
    %546 = vmatpush1.msra.mxu0 0.0
    %547 = vmatprep.subr.mxu0 0.0
    %548 = vmatpush1.msra.mxu0 0.0
    %549 = vmatprep.subr.mxu0 0.0
    %550 = vmatpush1.msra.mxu0 0.0
    %551 = vmatprep.subr.mxu0 0.0
    %552 = vmatpush1.msra.mxu0 0.0
    %553 = vmatprep.mubr.f32.mxu0 0.0
    %554 = vmatmul.mubr.f32.gmra.mrb[0].mxu0 %v478
    %v555 = vpop.f32.mrb[0].mxu0
    %v556 = vadd.f32 0.0, %v555
    %v557 = vpop.f32.mrb[0].mxu0
    %558 = vmatprep.mubr.f32.mxu0 0.0
    %559 = vmatmul.mubr.f32.gmra.mrb[0].mxu0 %v481
    %v560 = vpop.f32.mrb[0].mxu0
    %v561 = vadd.f32 0.0, %v560
    %v562 = vpop.f32.mrb[0].mxu0
    %563 = vmatprep.mubr.f32.mxu0 0.0
    %564 = vmatmul.mubr.f32.gmra.mrb[0].mxu0 %v484
    %v565 = vpop.f32.mrb[0].mxu0
    %v566 = vadd.f32 0.0, %v565
    %v567 = vpop.f32.mrb[0].mxu0
    %568 = vmatprep.mubr.f32.mxu0 0.0
    %569 = vmatmul.mubr.f32.gmra.mrb[0].mxu0 %v487
    %v570 = vpop.f32.mrb[0].mxu0
    %v571 = vadd.f32 0.0, %v570
    %v572 = vpop.f32.mrb[0].mxu0
    %573 = vdwg.mxu0
    %v574 = vadd.f32 %v353, %v556
    %v575 = vadd.f32 %v358, %v561
    %v576 = vadd.f32 %v363, %v566
    %v577 = vadd.f32 %v368, %v571
    %v578 = vld [vmem:[%s2] sm:$0x1]
    %v580 = vlaneseq
    %v581 = vshrl.u32 %v580, 7
    %v582 = vsub.s32 0, %v581
    %v583 = vrot.slane %v578, %v582
    %v585 = vadd.f32 %v574, %v583
    %v586 = vadd.f32 %v575, %v583
    %v587 = vadd.f32 %v576, %v583
    %v588 = vadd.f32 %v577, %v583
    %v589 = vadd.f32 %v585, %v586
    %v590 = vadd.f32 %v589, %v587
    %v591 = vadd.f32 %v590, %v588
    %v592 = vrot.slane %v591, 4
    %v593 = vadd.f32 %v591, %v592
    %v594 = vrot.slane %v593, 2
    %v595 = vadd.f32 %v593, %v594
    %v596 = vrot.slane %v595, 1
    %v597 = vadd.f32 %v595, %v596
    %v598 = vmul.f32 %v585, %v585
    %v599 = vmul.f32 %v586, %v586
    %v600 = vmul.f32 %v587, %v587
    %v601 = vmul.f32 %v588, %v588
    %v602 = vadd.f32 %v598, %v599
    %v603 = vadd.f32 %v602, %v600
    %v604 = vadd.f32 %v603, %v601
    %v605 = vrot.slane %v604, 4
    %v606 = vadd.f32 %v604, %v605
    %v607 = vrot.slane %v606, 2
    %v608 = vadd.f32 %v606, %v607
    %v609 = vrot.slane %v608, 1
    %v610 = vadd.f32 %v608, %v609
    %v611 = vld [vmem:[%s11] sm:$0xff]
    %v612 = vld [vmem:[%s11 + $0x8] sm:$0xff]
    %v613 = vld [vmem:[%s11 + $0x10] sm:$0xff]
    %v614 = vld [vmem:[%s11 + $0x18] sm:$0xff]
    %v615 = vld [vmem:[%s11 + $0x20] sm:$0xff]
    %v616 = vld [vmem:[%s11 + $0x28] sm:$0xff]
    %v617 = vld [vmem:[%s11 + $0x30] sm:$0xff]
    %v618 = vld [vmem:[%s11 + $0x38] sm:$0xff]
    %v619 = vld [vmem:[%s11 + $0x40] sm:$0xff]
    %v620 = vld [vmem:[%s11 + $0x48] sm:$0xff]
    %v621 = vld [vmem:[%s11 + $0x50] sm:$0xff]
    %v622 = vld [vmem:[%s11 + $0x58] sm:$0xff]
    %v623 = vld [vmem:[%s11 + $0x60] sm:$0xff]
    %v624 = vld [vmem:[%s11 + $0x68] sm:$0xff]
    %v625 = vld [vmem:[%s11 + $0x70] sm:$0xff]
    %v626 = vld [vmem:[%s11 + $0x78] sm:$0xff]
    %627 = vmatprep.subr.mxu0 0.0
    %628 = vmatpush1.msra.mxu0 %v611
    %629 = vmatprep.subr.mxu0 0.0
    %630 = vmatpush1.msra.mxu0 %v612
    %631 = vmatprep.subr.mxu0 0.0
    %632 = vmatpush1.msra.mxu0 %v613
    %633 = vmatprep.subr.mxu0 0.0
    %634 = vmatpush1.msra.mxu0 %v614
    %635 = vmatprep.subr.mxu0 0.0
    %636 = vmatpush1.msra.mxu0 %v615
    %637 = vmatprep.subr.mxu0 0.0
    %638 = vmatpush1.msra.mxu0 %v616
    %639 = vmatprep.subr.mxu0 0.0
    %640 = vmatpush1.msra.mxu0 %v617
    %641 = vmatprep.subr.mxu0 0.0
    %642 = vmatpush1.msra.mxu0 %v618
    %643 = vmatprep.subr.mxu0 0.0
    %644 = vmatpush1.msra.mxu0 %v619
    %645 = vmatprep.subr.mxu0 0.0
    %646 = vmatpush1.msra.mxu0 %v620
    %647 = vmatprep.subr.mxu0 0.0
    %648 = vmatpush1.msra.mxu0 %v621
    %649 = vmatprep.subr.mxu0 0.0
    %650 = vmatpush1.msra.mxu0 %v622
    %651 = vmatprep.subr.mxu0 0.0
    %652 = vmatpush1.msra.mxu0 %v623
    %653 = vmatprep.subr.mxu0 0.0
    %654 = vmatpush1.msra.mxu0 %v624
    %655 = vmatprep.subr.mxu0 0.0
    %656 = vmatpush1.msra.mxu0 %v625
    %657 = vmatprep.subr.mxu0 0.0
    %658 = vmatpush1.msra.mxu0 %v626
    %659 = vmatprep.subr.mxu0 0.0
    %660 = vmatpush1.msra.mxu0 0.0
    %661 = vmatprep.subr.mxu0 0.0
    %662 = vmatpush1.msra.mxu0 0.0
    %663 = vmatprep.subr.mxu0 0.0
    %664 = vmatpush1.msra.mxu0 0.0
    %665 = vmatprep.subr.mxu0 0.0
    %666 = vmatpush1.msra.mxu0 0.0
    %667 = vmatprep.subr.mxu0 0.0
    %668 = vmatpush1.msra.mxu0 0.0
    %669 = vmatprep.subr.mxu0 0.0
    %670 = vmatpush1.msra.mxu0 0.0
    %671 = vmatprep.subr.mxu0 0.0
    %672 = vmatpush1.msra.mxu0 0.0
    %673 = vmatprep.subr.mxu0 0.0
    %674 = vmatpush1.msra.mxu0 0.0
    %675 = vmatprep.subr.mxu0 0.0
    %676 = vmatpush1.msra.mxu0 0.0
    %677 = vmatprep.subr.mxu0 0.0
    %678 = vmatpush1.msra.mxu0 0.0
    %679 = vmatprep.subr.mxu0 0.0
    %680 = vmatpush1.msra.mxu0 0.0
    %681 = vmatprep.subr.mxu0 0.0
    %682 = vmatpush1.msra.mxu0 0.0
    %683 = vmatprep.subr.mxu0 0.0
    %684 = vmatpush1.msra.mxu0 0.0
    %685 = vmatprep.subr.mxu0 0.0
    %686 = vmatpush1.msra.mxu0 0.0
    %687 = vmatprep.subr.mxu0 0.0
    %688 = vmatpush1.msra.mxu0 0.0
    %689 = vmatprep.subr.mxu0 0.0
    %690 = vmatpush1.msra.mxu0 0.0
    %691 = vmatprep.mubr.f32.mxu0 0.0
    %692 = vmatmul.mubr.f32.gmra.mrb[0].mxu0 %v597
    %v693 = vpop.f32.mrb[0].mxu0
    %v694 = vadd.f32 0.0, %v693
    %v695 = vpop.f32.mrb[0].mxu0
    %696 = vdwg.mxu0
    %697 = vmatprep.subr.mxu0 0.0
    %698 = vmatpush1.msra.mxu0 %v611
    %699 = vmatprep.subr.mxu0 0.0
    %700 = vmatpush1.msra.mxu0 %v612
    %701 = vmatprep.subr.mxu0 0.0
    %702 = vmatpush1.msra.mxu0 %v613
    %703 = vmatprep.subr.mxu0 0.0
    %704 = vmatpush1.msra.mxu0 %v614
    %705 = vmatprep.subr.mxu0 0.0
    %706 = vmatpush1.msra.mxu0 %v615
    %707 = vmatprep.subr.mxu0 0.0
    %708 = vmatpush1.msra.mxu0 %v616
    %709 = vmatprep.subr.mxu0 0.0
    %710 = vmatpush1.msra.mxu0 %v617
    %711 = vmatprep.subr.mxu0 0.0
    %712 = vmatpush1.msra.mxu0 %v618
    %713 = vmatprep.subr.mxu0 0.0
    %714 = vmatpush1.msra.mxu0 %v619
    %715 = vmatprep.subr.mxu0 0.0
    %716 = vmatpush1.msra.mxu0 %v620
    %717 = vmatprep.subr.mxu0 0.0
    %718 = vmatpush1.msra.mxu0 %v621
    %719 = vmatprep.subr.mxu0 0.0
    %720 = vmatpush1.msra.mxu0 %v622
    %721 = vmatprep.subr.mxu0 0.0
    %722 = vmatpush1.msra.mxu0 %v623
    %723 = vmatprep.subr.mxu0 0.0
    %724 = vmatpush1.msra.mxu0 %v624
    %725 = vmatprep.subr.mxu0 0.0
    %726 = vmatpush1.msra.mxu0 %v625
    %727 = vmatprep.subr.mxu0 0.0
    %728 = vmatpush1.msra.mxu0 %v626
    %729 = vmatprep.subr.mxu0 0.0
    %730 = vmatpush1.msra.mxu0 0.0
    %731 = vmatprep.subr.mxu0 0.0
    %732 = vmatpush1.msra.mxu0 0.0
    %733 = vmatprep.subr.mxu0 0.0
    %734 = vmatpush1.msra.mxu0 0.0
    %735 = vmatprep.subr.mxu0 0.0
    %736 = vmatpush1.msra.mxu0 0.0
    %737 = vmatprep.subr.mxu0 0.0
    %738 = vmatpush1.msra.mxu0 0.0
    %739 = vmatprep.subr.mxu0 0.0
    %740 = vmatpush1.msra.mxu0 0.0
    %741 = vmatprep.subr.mxu0 0.0
    %742 = vmatpush1.msra.mxu0 0.0
    %743 = vmatprep.subr.mxu0 0.0
    %744 = vmatpush1.msra.mxu0 0.0
    %745 = vmatprep.subr.mxu0 0.0
    %746 = vmatpush1.msra.mxu0 0.0
    %747 = vmatprep.subr.mxu0 0.0
    %748 = vmatpush1.msra.mxu0 0.0
    %749 = vmatprep.subr.mxu0 0.0
    %750 = vmatpush1.msra.mxu0 0.0
    %751 = vmatprep.subr.mxu0 0.0
    %752 = vmatpush1.msra.mxu0 0.0
    %753 = vmatprep.subr.mxu0 0.0
    %754 = vmatpush1.msra.mxu0 0.0
    %755 = vmatprep.subr.mxu0 0.0
    %756 = vmatpush1.msra.mxu0 0.0
    %757 = vmatprep.subr.mxu0 0.0
    %758 = vmatpush1.msra.mxu0 0.0
    %759 = vmatprep.subr.mxu0 0.0
    %760 = vmatpush1.msra.mxu0 0.0
    %761 = vmatprep.mubr.f32.mxu0 0.0
    %762 = vmatmul.mubr.f32.gmra.mrb[0].mxu0 %v610
    %v763 = vpop.f32.mrb[0].mxu0
    %v764 = vadd.f32 0.0, %v763
    %v765 = vpop.f32.mrb[0].mxu0
    %766 = vdwg.mxu0
    %v767 = vmul.f32 %v694, %v694
    %v768 = vsub.f32 %v764, %v767
    %v769 = vld [vmem:[%s3] sm:$0x1]
    %v770 = vadd.f32 %v768, 1e-05
    %v771 = vrsqrt.pop %v770
    %v772 = vmul.f32 %v769, %v771
    %v773 = vld [vmem:[%s4] sm:$0x1]
    %v774 = vmul.f32 %v694, %v772
    %v775 = vsub.f32 %v773, %v774
    %v777 = vlaneseq
    %v778 = vshrl.u32 %v777, 7
    %v779 = vsub.s32 0, %v778
    %v780 = vrot.slane %v772, %v779
    %v782 = vmul.f32 %v585, %v780
    %v783 = vmul.f32 %v586, %v780
    %v784 = vmul.f32 %v587, %v780
    %v785 = vmul.f32 %v588, %v780
    %v787 = vlaneseq
    %v788 = vshrl.u32 %v787, 7
    %v789 = vsub.s32 0, %v788
    %v790 = vrot.slane %v775, %v789
    %v792 = vadd.f32 %v782, %v790
    %v793 = vadd.f32 %v783, %v790
    %v794 = vadd.f32 %v784, %v790
    %v795 = vadd.f32 %v785, %v790
    %v796 = vmax.f32 %v792, 0.0
    %v797 = vmax.f32 %v793, 0.0
    %v798 = vmax.f32 %v794, 0.0
    %v799 = vmax.f32 %v795, 0.0
    %800 = vmatprep.subr.mxu0 0.0
    %801 = vmatpush1.msra.mxu0 %v796
    %802 = vmatprep.subr.mxu0 0.0
    %803 = vmatpush1.msra.mxu0 %v797
    %804 = vmatprep.subr.mxu0 0.0
    %805 = vmatpush1.msra.mxu0 %v798
    %806 = vmatprep.subr.mxu0 0.0
    %807 = vmatpush1.msra.mxu0 %v799
    %808 = vmatprep.subr.mxu0 0.0
    %809 = vmatpush1.msra.mxu0 0.0
    %810 = vmatprep.subr.mxu0 0.0
    %811 = vmatpush1.msra.mxu0 0.0
    %812 = vmatprep.subr.mxu0 0.0
    %813 = vmatpush1.msra.mxu0 0.0
    %814 = vmatprep.subr.mxu0 0.0
    %815 = vmatpush1.msra.mxu0 0.0
    %816 = vmatprep.subr.mxu0 0.0
    %817 = vmatpush1.msra.mxu0 0.0
    %818 = vmatprep.subr.mxu0 0.0
    %819 = vmatpush1.msra.mxu0 0.0
    %820 = vmatprep.subr.mxu0 0.0
    %821 = vmatpush1.msra.mxu0 0.0
    %822 = vmatprep.subr.mxu0 0.0
    %823 = vmatpush1.msra.mxu0 0.0
    %824 = vmatprep.subr.mxu0 0.0
    %825 = vmatpush1.msra.mxu0 0.0
    %826 = vmatprep.subr.mxu0 0.0
    %827 = vmatpush1.msra.mxu0 0.0
    %828 = vmatprep.subr.mxu0 0.0
    %829 = vmatpush1.msra.mxu0 0.0
    %830 = vmatprep.subr.mxu0 0.0
    %831 = vmatpush1.msra.mxu0 0.0
    %832 = vmatprep.subr.mxu0 0.0
    %833 = vmatpush1.msra.mxu0 0.0
    %834 = vmatprep.subr.mxu0 0.0
    %835 = vmatpush1.msra.mxu0 0.0
    %836 = vmatprep.subr.mxu0 0.0
    %837 = vmatpush1.msra.mxu0 0.0
    %838 = vmatprep.subr.mxu0 0.0
    %839 = vmatpush1.msra.mxu0 0.0
    %840 = vmatprep.subr.mxu0 0.0
    %841 = vmatpush1.msra.mxu0 0.0
    %842 = vmatprep.subr.mxu0 0.0
    %843 = vmatpush1.msra.mxu0 0.0
    %844 = vmatprep.subr.mxu0 0.0
    %845 = vmatpush1.msra.mxu0 0.0
    %846 = vmatprep.subr.mxu0 0.0
    %847 = vmatpush1.msra.mxu0 0.0
    %848 = vmatprep.subr.mxu0 0.0
    %849 = vmatpush1.msra.mxu0 0.0
    %850 = vmatprep.subr.mxu0 0.0
    %851 = vmatpush1.msra.mxu0 0.0
    %852 = vmatprep.subr.mxu0 0.0
    %853 = vmatpush1.msra.mxu0 0.0
    %854 = vmatprep.subr.mxu0 0.0
    %855 = vmatpush1.msra.mxu0 0.0
    %856 = vmatprep.subr.mxu0 0.0
    %857 = vmatpush1.msra.mxu0 0.0
    %858 = vmatprep.subr.mxu0 0.0
    %859 = vmatpush1.msra.mxu0 0.0
    %860 = vmatprep.subr.mxu0 0.0
    %861 = vmatpush1.msra.mxu0 0.0
    %862 = vmatprep.subr.mxu0 0.0
    %863 = vmatpush1.msra.mxu0 0.0
    %864 = vmatprep.mubr.f32.mxu0 0.0
    %865 = vmatmul.mubr.f32.gmra.mrb[0].mxu0 %v63
    %v866 = vpop.f32.mrb[0].mxu0
    %v867 = vadd.f32 0.0, %v866
    %v868 = vpop.f32.mrb[0].mxu0
    %869 = vmatprep.mubr.f32.mxu0 0.0
    %870 = vmatmul.mubr.f32.gmra.mrb[0].mxu0 %v66
    %v871 = vpop.f32.mrb[0].mxu0
    %v872 = vadd.f32 0.0, %v871
    %v873 = vpop.f32.mrb[0].mxu0
    %874 = vmatprep.mubr.f32.mxu0 0.0
    %875 = vmatmul.mubr.f32.gmra.mrb[0].mxu0 %v69
    %v876 = vpop.f32.mrb[0].mxu0
    %v877 = vadd.f32 0.0, %v876
    %v878 = vpop.f32.mrb[0].mxu0
    %879 = vmatprep.mubr.f32.mxu0 0.0
    %880 = vmatmul.mubr.f32.gmra.mrb[0].mxu0 %v72
    %v881 = vpop.f32.mrb[0].mxu0
    %v882 = vadd.f32 0.0, %v881
    %v883 = vpop.f32.mrb[0].mxu0
    %884 = vdwg.mxu0
    %v885 = vld [vmem:[%s5] sm:$0xff]
    %v886 = vld [vmem:[%s5 + $0x8] sm:$0xff]
    %v887 = vld [vmem:[%s5 + $0x10] sm:$0xff]
    %v888 = vld [vmem:[%s5 + $0x18] sm:$0xff]
    %v889 = vld [vmem:[%s5 + $0x20] sm:$0xff]
    %v890 = vld [vmem:[%s5 + $0x28] sm:$0xff]
    %v891 = vld [vmem:[%s5 + $0x30] sm:$0xff]
    %v892 = vld [vmem:[%s5 + $0x38] sm:$0xff]
    %v893 = vld [vmem:[%s5 + $0x40] sm:$0xff]
    %v894 = vld [vmem:[%s5 + $0x48] sm:$0xff]
    %v895 = vld [vmem:[%s5 + $0x50] sm:$0xff]
    %v896 = vld [vmem:[%s5 + $0x58] sm:$0xff]
    %v897 = vld [vmem:[%s5 + $0x60] sm:$0xff]
    %v898 = vld [vmem:[%s5 + $0x68] sm:$0xff]
    %v899 = vld [vmem:[%s5 + $0x70] sm:$0xff]
    %v900 = vld [vmem:[%s5 + $0x78] sm:$0xff]
    %s901 = scalar_lea.vmem %s5, 128
    %v902 = vld [vmem:[%s901] sm:$0xff]
    %v903 = vld [vmem:[%s901 + $0x8] sm:$0xff]
    %v904 = vld [vmem:[%s901 + $0x10] sm:$0xff]
    %v905 = vld [vmem:[%s901 + $0x18] sm:$0xff]
    %v906 = vld [vmem:[%s901 + $0x20] sm:$0xff]
    %v907 = vld [vmem:[%s901 + $0x28] sm:$0xff]
    %v908 = vld [vmem:[%s901 + $0x30] sm:$0xff]
    %v909 = vld [vmem:[%s901 + $0x38] sm:$0xff]
    %v910 = vld [vmem:[%s901 + $0x40] sm:$0xff]
    %v911 = vld [vmem:[%s901 + $0x48] sm:$0xff]
    %v912 = vld [vmem:[%s901 + $0x50] sm:$0xff]
    %v913 = vld [vmem:[%s901 + $0x58] sm:$0xff]
    %v914 = vld [vmem:[%s901 + $0x60] sm:$0xff]
    %v915 = vld [vmem:[%s901 + $0x68] sm:$0xff]
    %v916 = vld [vmem:[%s901 + $0x70] sm:$0xff]
    %v917 = vld [vmem:[%s901 + $0x78] sm:$0xff]
    %918 = vmatprep.subr.mxu0 0.0
    %919 = vmatpush1.msra.mxu0 %v902
    %920 = vmatprep.subr.mxu0 0.0
    %921 = vmatpush1.msra.mxu0 %v903
    %922 = vmatprep.subr.mxu0 0.0
    %923 = vmatpush1.msra.mxu0 %v904
    %924 = vmatprep.subr.mxu0 0.0
    %925 = vmatpush1.msra.mxu0 %v905
    %926 = vmatprep.subr.mxu0 0.0
    %927 = vmatpush1.msra.mxu0 %v906
    %928 = vmatprep.subr.mxu0 0.0
    %929 = vmatpush1.msra.mxu0 %v907
    %930 = vmatprep.subr.mxu0 0.0
    %931 = vmatpush1.msra.mxu0 %v908
    %932 = vmatprep.subr.mxu0 0.0
    %933 = vmatpush1.msra.mxu0 %v909
    %934 = vmatprep.subr.mxu0 0.0
    %935 = vmatpush1.msra.mxu0 %v910
    %936 = vmatprep.subr.mxu0 0.0
    %937 = vmatpush1.msra.mxu0 %v911
    %938 = vmatprep.subr.mxu0 0.0
    %939 = vmatpush1.msra.mxu0 %v912
    %940 = vmatprep.subr.mxu0 0.0
    %941 = vmatpush1.msra.mxu0 %v913
    %942 = vmatprep.subr.mxu0 0.0
    %943 = vmatpush1.msra.mxu0 %v914
    %944 = vmatprep.subr.mxu0 0.0
    %945 = vmatpush1.msra.mxu0 %v915
    %946 = vmatprep.subr.mxu0 0.0
    %947 = vmatpush1.msra.mxu0 %v916
    %948 = vmatprep.subr.mxu0 0.0
    %949 = vmatpush1.msra.mxu0 %v917
    %950 = vmatprep.subr.mxu0 0.0
    %951 = vmatpush1.msra.mxu0 0.0
    %952 = vmatprep.subr.mxu0 0.0
    %953 = vmatpush1.msra.mxu0 0.0
    %954 = vmatprep.subr.mxu0 0.0
    %955 = vmatpush1.msra.mxu0 0.0
    %956 = vmatprep.subr.mxu0 0.0
    %957 = vmatpush1.msra.mxu0 0.0
    %958 = vmatprep.subr.mxu0 0.0
    %959 = vmatpush1.msra.mxu0 0.0
    %960 = vmatprep.subr.mxu0 0.0
    %961 = vmatpush1.msra.mxu0 0.0
    %962 = vmatprep.subr.mxu0 0.0
    %963 = vmatpush1.msra.mxu0 0.0
    %964 = vmatprep.subr.mxu0 0.0
    %965 = vmatpush1.msra.mxu0 0.0
    %966 = vmatprep.subr.mxu0 0.0
    %967 = vmatpush1.msra.mxu0 0.0
    %968 = vmatprep.subr.mxu0 0.0
    %969 = vmatpush1.msra.mxu0 0.0
    %970 = vmatprep.subr.mxu0 0.0
    %971 = vmatpush1.msra.mxu0 0.0
    %972 = vmatprep.subr.mxu0 0.0
    %973 = vmatpush1.msra.mxu0 0.0
    %974 = vmatprep.subr.mxu0 0.0
    %975 = vmatpush1.msra.mxu0 0.0
    %976 = vmatprep.subr.mxu0 0.0
    %977 = vmatpush1.msra.mxu0 0.0
    %978 = vmatprep.subr.mxu0 0.0
    %979 = vmatpush1.msra.mxu0 0.0
    %980 = vmatprep.subr.mxu0 0.0
    %981 = vmatpush1.msra.mxu0 0.0
    %982 = vmatprep.mubr.f32.mxu0 0.0
    %983 = vmatmul.mubr.f32.gmra.mrb[0].mxu0 %v796
    %v984 = vpop.f32.mrb[0].mxu0
    %v985 = vadd.f32 0.0, %v984
    %v986 = vpop.f32.mrb[0].mxu0
    %987 = vmatprep.mubr.f32.mxu0 0.0
    %988 = vmatmul.mubr.f32.gmra.mrb[0].mxu0 %v797
    %v989 = vpop.f32.mrb[0].mxu0
    %v990 = vadd.f32 0.0, %v989
    %v991 = vpop.f32.mrb[0].mxu0
    %992 = vmatprep.mubr.f32.mxu0 0.0
    %993 = vmatmul.mubr.f32.gmra.mrb[0].mxu0 %v798
    %v994 = vpop.f32.mrb[0].mxu0
    %v995 = vadd.f32 0.0, %v994
    %v996 = vpop.f32.mrb[0].mxu0
    %997 = vmatprep.mubr.f32.mxu0 0.0
    %998 = vmatmul.mubr.f32.gmra.mrb[0].mxu0 %v799
    %v999 = vpop.f32.mrb[0].mxu0
    %v1000 = vadd.f32 0.0, %v999
    %v1001 = vpop.f32.mrb[0].mxu0
    %1002 = vdwg.mxu0
    %1003 = vmatprep.subr.mxu0 0.0
    %1004 = vmatpush1.msra.mxu0 %v885
    %1005 = vmatprep.subr.mxu0 0.0
    %1006 = vmatpush1.msra.mxu0 %v886
    %1007 = vmatprep.subr.mxu0 0.0
    %1008 = vmatpush1.msra.mxu0 %v887
    %1009 = vmatprep.subr.mxu0 0.0
    %1010 = vmatpush1.msra.mxu0 %v888
    %1011 = vmatprep.subr.mxu0 0.0
    %1012 = vmatpush1.msra.mxu0 %v889
    %1013 = vmatprep.subr.mxu0 0.0
    %1014 = vmatpush1.msra.mxu0 %v890
    %1015 = vmatprep.subr.mxu0 0.0
    %1016 = vmatpush1.msra.mxu0 %v891
    %1017 = vmatprep.subr.mxu0 0.0
    %1018 = vmatpush1.msra.mxu0 %v892
    %1019 = vmatprep.subr.mxu0 0.0
    %1020 = vmatpush1.msra.mxu0 %v893
    %1021 = vmatprep.subr.mxu0 0.0
    %1022 = vmatpush1.msra.mxu0 %v894
    %1023 = vmatprep.subr.mxu0 0.0
    %1024 = vmatpush1.msra.mxu0 %v895
    %1025 = vmatprep.subr.mxu0 0.0
    %1026 = vmatpush1.msra.mxu0 %v896
    %1027 = vmatprep.subr.mxu0 0.0
    %1028 = vmatpush1.msra.mxu0 %v897
    %1029 = vmatprep.subr.mxu0 0.0
    %1030 = vmatpush1.msra.mxu0 %v898
    %1031 = vmatprep.subr.mxu0 0.0
    %1032 = vmatpush1.msra.mxu0 %v899
    %1033 = vmatprep.subr.mxu0 0.0
    %1034 = vmatpush1.msra.mxu0 %v900
    %1035 = vmatprep.subr.mxu0 0.0
    %1036 = vmatpush1.msra.mxu0 0.0
    %1037 = vmatprep.subr.mxu0 0.0
    %1038 = vmatpush1.msra.mxu0 0.0
    %1039 = vmatprep.subr.mxu0 0.0
    %1040 = vmatpush1.msra.mxu0 0.0
    %1041 = vmatprep.subr.mxu0 0.0
    %1042 = vmatpush1.msra.mxu0 0.0
    %1043 = vmatprep.subr.mxu0 0.0
    %1044 = vmatpush1.msra.mxu0 0.0
    %1045 = vmatprep.subr.mxu0 0.0
    %1046 = vmatpush1.msra.mxu0 0.0
    %1047 = vmatprep.subr.mxu0 0.0
    %1048 = vmatpush1.msra.mxu0 0.0
    %1049 = vmatprep.subr.mxu0 0.0
    %1050 = vmatpush1.msra.mxu0 0.0
    %1051 = vmatprep.subr.mxu0 0.0
    %1052 = vmatpush1.msra.mxu0 0.0
    %1053 = vmatprep.subr.mxu0 0.0
    %1054 = vmatpush1.msra.mxu0 0.0
    %1055 = vmatprep.subr.mxu0 0.0
    %1056 = vmatpush1.msra.mxu0 0.0
    %1057 = vmatprep.subr.mxu0 0.0
    %1058 = vmatpush1.msra.mxu0 0.0
    %1059 = vmatprep.subr.mxu0 0.0
    %1060 = vmatpush1.msra.mxu0 0.0
    %1061 = vmatprep.subr.mxu0 0.0
    %1062 = vmatpush1.msra.mxu0 0.0
    %1063 = vmatprep.subr.mxu0 0.0
    %1064 = vmatpush1.msra.mxu0 0.0
    %1065 = vmatprep.subr.mxu0 0.0
    %1066 = vmatpush1.msra.mxu0 0.0
    %1067 = vmatprep.mubr.f32.mxu0 0.0
    %1068 = vmatmul.mubr.f32.gmra.mrb[0].mxu0 %v867
    %v1069 = vpop.f32.mrb[0].mxu0
    %v1070 = vadd.f32 %v985, %v1069
    %v1071 = vpop.f32.mrb[0].mxu0
    %1072 = vmatprep.mubr.f32.mxu0 0.0
    %1073 = vmatmul.mubr.f32.gmra.mrb[0].mxu0 %v872
    %v1074 = vpop.f32.mrb[0].mxu0
    %v1075 = vadd.f32 %v990, %v1074
    %v1076 = vpop.f32.mrb[0].mxu0
    %1077 = vmatprep.mubr.f32.mxu0 0.0
    %1078 = vmatmul.mubr.f32.gmra.mrb[0].mxu0 %v877
    %v1079 = vpop.f32.mrb[0].mxu0
    %v1080 = vadd.f32 %v995, %v1079
    %v1081 = vpop.f32.mrb[0].mxu0
    %1082 = vmatprep.mubr.f32.mxu0 0.0
    %1083 = vmatmul.mubr.f32.gmra.mrb[0].mxu0 %v882
    %v1084 = vpop.f32.mrb[0].mxu0
    %v1085 = vadd.f32 %v1000, %v1084
    %v1086 = vpop.f32.mrb[0].mxu0
    %1087 = vdwg.mxu0
    %1088 = vmatprep.subr.mxu0 0.0
    %1089 = vmatpush1.msra.mxu0 %v796
    %1090 = vmatprep.subr.mxu0 0.0
    %1091 = vmatpush1.msra.mxu0 %v797
    %1092 = vmatprep.subr.mxu0 0.0
    %1093 = vmatpush1.msra.mxu0 %v798
    %1094 = vmatprep.subr.mxu0 0.0
    %1095 = vmatpush1.msra.mxu0 %v799
    %1096 = vmatprep.subr.mxu0 0.0
    %1097 = vmatpush1.msra.mxu0 0.0
    %1098 = vmatprep.subr.mxu0 0.0
    %1099 = vmatpush1.msra.mxu0 0.0
    %1100 = vmatprep.subr.mxu0 0.0
    %1101 = vmatpush1.msra.mxu0 0.0
    %1102 = vmatprep.subr.mxu0 0.0
    %1103 = vmatpush1.msra.mxu0 0.0
    %1104 = vmatprep.subr.mxu0 0.0
    %1105 = vmatpush1.msra.mxu0 0.0
    %1106 = vmatprep.subr.mxu0 0.0
    %1107 = vmatpush1.msra.mxu0 0.0
    %1108 = vmatprep.subr.mxu0 0.0
    %1109 = vmatpush1.msra.mxu0 0.0
    %1110 = vmatprep.subr.mxu0 0.0
    %1111 = vmatpush1.msra.mxu0 0.0
    %1112 = vmatprep.subr.mxu0 0.0
    %1113 = vmatpush1.msra.mxu0 0.0
    %1114 = vmatprep.subr.mxu0 0.0
    %1115 = vmatpush1.msra.mxu0 0.0
    %1116 = vmatprep.subr.mxu0 0.0
    %1117 = vmatpush1.msra.mxu0 0.0
    %1118 = vmatprep.subr.mxu0 0.0
    %1119 = vmatpush1.msra.mxu0 0.0
    %1120 = vmatprep.subr.mxu0 0.0
    %1121 = vmatpush1.msra.mxu0 0.0
    %1122 = vmatprep.subr.mxu0 0.0
    %1123 = vmatpush1.msra.mxu0 0.0
    %1124 = vmatprep.subr.mxu0 0.0
    %1125 = vmatpush1.msra.mxu0 0.0
    %1126 = vmatprep.subr.mxu0 0.0
    %1127 = vmatpush1.msra.mxu0 0.0
    %1128 = vmatprep.subr.mxu0 0.0
    %1129 = vmatpush1.msra.mxu0 0.0
    %1130 = vmatprep.subr.mxu0 0.0
    %1131 = vmatpush1.msra.mxu0 0.0
    %1132 = vmatprep.subr.mxu0 0.0
    %1133 = vmatpush1.msra.mxu0 0.0
    %1134 = vmatprep.subr.mxu0 0.0
    %1135 = vmatpush1.msra.mxu0 0.0
    %1136 = vmatprep.subr.mxu0 0.0
    %1137 = vmatpush1.msra.mxu0 0.0
    %1138 = vmatprep.subr.mxu0 0.0
    %1139 = vmatpush1.msra.mxu0 0.0
    %1140 = vmatprep.subr.mxu0 0.0
    %1141 = vmatpush1.msra.mxu0 0.0
    %1142 = vmatprep.subr.mxu0 0.0
    %1143 = vmatpush1.msra.mxu0 0.0
    %1144 = vmatprep.subr.mxu0 0.0
    %1145 = vmatpush1.msra.mxu0 0.0
    %1146 = vmatprep.subr.mxu0 0.0
    %1147 = vmatpush1.msra.mxu0 0.0
    %1148 = vmatprep.subr.mxu0 0.0
    %1149 = vmatpush1.msra.mxu0 0.0
    %1150 = vmatprep.subr.mxu0 0.0
    %1151 = vmatpush1.msra.mxu0 0.0
    %1152 = vmatprep.mubr.f32.mxu0 0.0
    %1153 = vmatmul.mubr.f32.gmra.mrb[0].mxu0 %v372
    %v1154 = vpop.f32.mrb[0].mxu0
    %v1155 = vadd.f32 0.0, %v1154
    %v1156 = vpop.f32.mrb[0].mxu0
    %1157 = vmatprep.mubr.f32.mxu0 0.0
    %1158 = vmatmul.mubr.f32.gmra.mrb[0].mxu0 %v375
    %v1159 = vpop.f32.mrb[0].mxu0
    %v1160 = vadd.f32 0.0, %v1159
    %v1161 = vpop.f32.mrb[0].mxu0
    %1162 = vmatprep.mubr.f32.mxu0 0.0
    %1163 = vmatmul.mubr.f32.gmra.mrb[0].mxu0 %v378
    %v1164 = vpop.f32.mrb[0].mxu0
    %v1165 = vadd.f32 0.0, %v1164
    %v1166 = vpop.f32.mrb[0].mxu0
    %1167 = vmatprep.mubr.f32.mxu0 0.0
    %1168 = vmatmul.mubr.f32.gmra.mrb[0].mxu0 %v381
    %v1169 = vpop.f32.mrb[0].mxu0
    %v1170 = vadd.f32 0.0, %v1169
    %v1171 = vpop.f32.mrb[0].mxu0
    %1172 = vdwg.mxu0
    %s1173 = scalar_lea.vmem %s5, 256
    %v1174 = vld [vmem:[%s1173] sm:$0xff]
    %v1175 = vld [vmem:[%s1173 + $0x8] sm:$0xff]
    %v1176 = vld [vmem:[%s1173 + $0x10] sm:$0xff]
    %v1177 = vld [vmem:[%s1173 + $0x18] sm:$0xff]
    %v1178 = vld [vmem:[%s1173 + $0x20] sm:$0xff]
    %v1179 = vld [vmem:[%s1173 + $0x28] sm:$0xff]
    %v1180 = vld [vmem:[%s1173 + $0x30] sm:$0xff]
    %v1181 = vld [vmem:[%s1173 + $0x38] sm:$0xff]
    %v1182 = vld [vmem:[%s1173 + $0x40] sm:$0xff]
    %v1183 = vld [vmem:[%s1173 + $0x48] sm:$0xff]
    %v1184 = vld [vmem:[%s1173 + $0x50] sm:$0xff]
    %v1185 = vld [vmem:[%s1173 + $0x58] sm:$0xff]
    %v1186 = vld [vmem:[%s1173 + $0x60] sm:$0xff]
    %v1187 = vld [vmem:[%s1173 + $0x68] sm:$0xff]
    %v1188 = vld [vmem:[%s1173 + $0x70] sm:$0xff]
    %v1189 = vld [vmem:[%s1173 + $0x78] sm:$0xff]
    %1190 = vmatprep.subr.mxu0 0.0
    %1191 = vmatpush1.msra.mxu0 %v1174
    %1192 = vmatprep.subr.mxu0 0.0
    %1193 = vmatpush1.msra.mxu0 %v1175
    %1194 = vmatprep.subr.mxu0 0.0
    %1195 = vmatpush1.msra.mxu0 %v1176
    %1196 = vmatprep.subr.mxu0 0.0
    %1197 = vmatpush1.msra.mxu0 %v1177
    %1198 = vmatprep.subr.mxu0 0.0
    %1199 = vmatpush1.msra.mxu0 %v1178
    %1200 = vmatprep.subr.mxu0 0.0
    %1201 = vmatpush1.msra.mxu0 %v1179
    %1202 = vmatprep.subr.mxu0 0.0
    %1203 = vmatpush1.msra.mxu0 %v1180
    %1204 = vmatprep.subr.mxu0 0.0
    %1205 = vmatpush1.msra.mxu0 %v1181
    %1206 = vmatprep.subr.mxu0 0.0
    %1207 = vmatpush1.msra.mxu0 %v1182
    %1208 = vmatprep.subr.mxu0 0.0
    %1209 = vmatpush1.msra.mxu0 %v1183
    %1210 = vmatprep.subr.mxu0 0.0
    %1211 = vmatpush1.msra.mxu0 %v1184
    %1212 = vmatprep.subr.mxu0 0.0
    %1213 = vmatpush1.msra.mxu0 %v1185
    %1214 = vmatprep.subr.mxu0 0.0
    %1215 = vmatpush1.msra.mxu0 %v1186
    %1216 = vmatprep.subr.mxu0 0.0
    %1217 = vmatpush1.msra.mxu0 %v1187
    %1218 = vmatprep.subr.mxu0 0.0
    %1219 = vmatpush1.msra.mxu0 %v1188
    %1220 = vmatprep.subr.mxu0 0.0
    %1221 = vmatpush1.msra.mxu0 %v1189
    %1222 = vmatprep.subr.mxu0 0.0
    %1223 = vmatpush1.msra.mxu0 0.0
    %1224 = vmatprep.subr.mxu0 0.0
    %1225 = vmatpush1.msra.mxu0 0.0
    %1226 = vmatprep.subr.mxu0 0.0
    %1227 = vmatpush1.msra.mxu0 0.0
    %1228 = vmatprep.subr.mxu0 0.0
    %1229 = vmatpush1.msra.mxu0 0.0
    %1230 = vmatprep.subr.mxu0 0.0
    %1231 = vmatpush1.msra.mxu0 0.0
    %1232 = vmatprep.subr.mxu0 0.0
    %1233 = vmatpush1.msra.mxu0 0.0
    %1234 = vmatprep.subr.mxu0 0.0
    %1235 = vmatpush1.msra.mxu0 0.0
    %1236 = vmatprep.subr.mxu0 0.0
    %1237 = vmatpush1.msra.mxu0 0.0
    %1238 = vmatprep.subr.mxu0 0.0
    %1239 = vmatpush1.msra.mxu0 0.0
    %1240 = vmatprep.subr.mxu0 0.0
    %1241 = vmatpush1.msra.mxu0 0.0
    %1242 = vmatprep.subr.mxu0 0.0
    %1243 = vmatpush1.msra.mxu0 0.0
    %1244 = vmatprep.subr.mxu0 0.0
    %1245 = vmatpush1.msra.mxu0 0.0
    %1246 = vmatprep.subr.mxu0 0.0
    %1247 = vmatpush1.msra.mxu0 0.0
    %1248 = vmatprep.subr.mxu0 0.0
    %1249 = vmatpush1.msra.mxu0 0.0
    %1250 = vmatprep.subr.mxu0 0.0
    %1251 = vmatpush1.msra.mxu0 0.0
    %1252 = vmatprep.subr.mxu0 0.0
    %1253 = vmatpush1.msra.mxu0 0.0
    %1254 = vmatprep.mubr.f32.mxu0 0.0
    %1255 = vmatmul.mubr.f32.gmra.mrb[0].mxu0 %v1155
    %v1256 = vpop.f32.mrb[0].mxu0
    %v1257 = vadd.f32 0.0, %v1256
    %v1258 = vpop.f32.mrb[0].mxu0
    %1259 = vmatprep.mubr.f32.mxu0 0.0
    %1260 = vmatmul.mubr.f32.gmra.mrb[0].mxu0 %v1160
    %v1261 = vpop.f32.mrb[0].mxu0
    %v1262 = vadd.f32 0.0, %v1261
    %v1263 = vpop.f32.mrb[0].mxu0
    %1264 = vmatprep.mubr.f32.mxu0 0.0
    %1265 = vmatmul.mubr.f32.gmra.mrb[0].mxu0 %v1165
    %v1266 = vpop.f32.mrb[0].mxu0
    %v1267 = vadd.f32 0.0, %v1266
    %v1268 = vpop.f32.mrb[0].mxu0
    %1269 = vmatprep.mubr.f32.mxu0 0.0
    %1270 = vmatmul.mubr.f32.gmra.mrb[0].mxu0 %v1170
    %v1271 = vpop.f32.mrb[0].mxu0
    %v1272 = vadd.f32 0.0, %v1271
    %v1273 = vpop.f32.mrb[0].mxu0
    %1274 = vdwg.mxu0
    %v1275 = vadd.f32 %v1070, %v1257
    %v1276 = vadd.f32 %v1075, %v1262
    %v1277 = vadd.f32 %v1080, %v1267
    %v1278 = vadd.f32 %v1085, %v1272
    %v1279 = vld [vmem:[%s6] sm:$0xff]
    %v1280 = vld [vmem:[%s6 + $0x8] sm:$0xff]
    %v1281 = vld [vmem:[%s6 + $0x10] sm:$0xff]
    %v1282 = vld [vmem:[%s6 + $0x18] sm:$0xff]
    %v1283 = vld [vmem:[%s6 + $0x20] sm:$0xff]
    %v1284 = vld [vmem:[%s6 + $0x28] sm:$0xff]
    %v1285 = vld [vmem:[%s6 + $0x30] sm:$0xff]
    %v1286 = vld [vmem:[%s6 + $0x38] sm:$0xff]
    %v1287 = vld [vmem:[%s6 + $0x40] sm:$0xff]
    %v1288 = vld [vmem:[%s6 + $0x48] sm:$0xff]
    %v1289 = vld [vmem:[%s6 + $0x50] sm:$0xff]
    %v1290 = vld [vmem:[%s6 + $0x58] sm:$0xff]
    %v1291 = vld [vmem:[%s6 + $0x60] sm:$0xff]
    %v1292 = vld [vmem:[%s6 + $0x68] sm:$0xff]
    %v1293 = vld [vmem:[%s6 + $0x70] sm:$0xff]
    %v1294 = vld [vmem:[%s6 + $0x78] sm:$0xff]
    %v1295 = vld [vmem:[%s7] sm:$0x1]
    %v1297 = vlaneseq
    %v1298 = vshrl.u32 %v1297, 7
    %v1299 = vsub.s32 0, %v1298
    %v1300 = vrot.slane %v1295, %v1299
    %1302 = vmatprep.subr.mxu0 0.0
    %1303 = vmatpush1.msra.mxu0 %v1279
    %1304 = vmatprep.subr.mxu0 0.0
    %1305 = vmatpush1.msra.mxu0 %v1280
    %1306 = vmatprep.subr.mxu0 0.0
    %1307 = vmatpush1.msra.mxu0 %v1281
    %1308 = vmatprep.subr.mxu0 0.0
    %1309 = vmatpush1.msra.mxu0 %v1282
    %1310 = vmatprep.subr.mxu0 0.0
    %1311 = vmatpush1.msra.mxu0 %v1283
    %1312 = vmatprep.subr.mxu0 0.0
    %1313 = vmatpush1.msra.mxu0 %v1284
    %1314 = vmatprep.subr.mxu0 0.0
    %1315 = vmatpush1.msra.mxu0 %v1285
    %1316 = vmatprep.subr.mxu0 0.0
    %1317 = vmatpush1.msra.mxu0 %v1286
    %1318 = vmatprep.subr.mxu0 0.0
    %1319 = vmatpush1.msra.mxu0 %v1287
    %1320 = vmatprep.subr.mxu0 0.0
    %1321 = vmatpush1.msra.mxu0 %v1288
    %1322 = vmatprep.subr.mxu0 0.0
    %1323 = vmatpush1.msra.mxu0 %v1289
    %1324 = vmatprep.subr.mxu0 0.0
    %1325 = vmatpush1.msra.mxu0 %v1290
    %1326 = vmatprep.subr.mxu0 0.0
    %1327 = vmatpush1.msra.mxu0 %v1291
    %1328 = vmatprep.subr.mxu0 0.0
    %1329 = vmatpush1.msra.mxu0 %v1292
    %1330 = vmatprep.subr.mxu0 0.0
    %1331 = vmatpush1.msra.mxu0 %v1293
    %1332 = vmatprep.subr.mxu0 0.0
    %1333 = vmatpush1.msra.mxu0 %v1294
    %1334 = vmatprep.subr.mxu0 0.0
    %1335 = vmatpush1.msra.mxu0 0.0
    %1336 = vmatprep.subr.mxu0 0.0
    %1337 = vmatpush1.msra.mxu0 0.0
    %1338 = vmatprep.subr.mxu0 0.0
    %1339 = vmatpush1.msra.mxu0 0.0
    %1340 = vmatprep.subr.mxu0 0.0
    %1341 = vmatpush1.msra.mxu0 0.0
    %1342 = vmatprep.subr.mxu0 0.0
    %1343 = vmatpush1.msra.mxu0 0.0
    %1344 = vmatprep.subr.mxu0 0.0
    %1345 = vmatpush1.msra.mxu0 0.0
    %1346 = vmatprep.subr.mxu0 0.0
    %1347 = vmatpush1.msra.mxu0 0.0
    %1348 = vmatprep.subr.mxu0 0.0
    %1349 = vmatpush1.msra.mxu0 0.0
    %1350 = vmatprep.subr.mxu0 0.0
    %1351 = vmatpush1.msra.mxu0 0.0
    %1352 = vmatprep.subr.mxu0 0.0
    %1353 = vmatpush1.msra.mxu0 0.0
    %1354 = vmatprep.subr.mxu0 0.0
    %1355 = vmatpush1.msra.mxu0 0.0
    %1356 = vmatprep.subr.mxu0 0.0
    %1357 = vmatpush1.msra.mxu0 0.0
    %1358 = vmatprep.subr.mxu0 0.0
    %1359 = vmatpush1.msra.mxu0 0.0
    %1360 = vmatprep.subr.mxu0 0.0
    %1361 = vmatpush1.msra.mxu0 0.0
    %1362 = vmatprep.subr.mxu0 0.0
    %1363 = vmatpush1.msra.mxu0 0.0
    %1364 = vmatprep.subr.mxu0 0.0
    %1365 = vmatpush1.msra.mxu0 0.0
    %1366 = vmatprep.mubr.f32.mxu0 0.0
    %1367 = vmatmul.mubr.f32.gmra.mrb[0].mxu0 %v1275
    %v1368 = vpop.f32.mrb[0].mxu0
    %v1369 = vadd.f32 %v1300, %v1368
    %v1370 = vpop.f32.mrb[0].mxu0
    %1371 = vmatprep.mubr.f32.mxu0 0.0
    %1372 = vmatmul.mubr.f32.gmra.mrb[0].mxu0 %v1276
    %v1373 = vpop.f32.mrb[0].mxu0
    %v1374 = vadd.f32 %v1300, %v1373
    %v1375 = vpop.f32.mrb[0].mxu0
    %1376 = vmatprep.mubr.f32.mxu0 0.0
    %1377 = vmatmul.mubr.f32.gmra.mrb[0].mxu0 %v1277
    %v1378 = vpop.f32.mrb[0].mxu0
    %v1379 = vadd.f32 %v1300, %v1378
    %v1380 = vpop.f32.mrb[0].mxu0
    %1381 = vmatprep.mubr.f32.mxu0 0.0
    %1382 = vmatmul.mubr.f32.gmra.mrb[0].mxu0 %v1278
    %v1383 = vpop.f32.mrb[0].mxu0
    %v1384 = vadd.f32 %v1300, %v1383
    %v1385 = vpop.f32.mrb[0].mxu0
    %1386 = vdwg.mxu0
    %v1387 = vadd.f32 %v796, %v1369
    %v1388 = vadd.f32 %v797, %v1374
    %v1389 = vadd.f32 %v798, %v1379
    %v1390 = vadd.f32 %v799, %v1384
    %1391 = vmatprep.subr.mxu0 0.0
    %1392 = vmatpush1.msra.mxu0 %v1387
    %1393 = vmatprep.subr.mxu0 0.0
    %1394 = vmatpush1.msra.mxu0 %v1388
    %1395 = vmatprep.subr.mxu0 0.0
    %1396 = vmatpush1.msra.mxu0 %v1389
    %1397 = vmatprep.subr.mxu0 0.0
    %1398 = vmatpush1.msra.mxu0 %v1390
    %1399 = vmatprep.subr.mxu0 0.0
    %1400 = vmatpush1.msra.mxu0 0.0
    %1401 = vmatprep.subr.mxu0 0.0
    %1402 = vmatpush1.msra.mxu0 0.0
    %1403 = vmatprep.subr.mxu0 0.0
    %1404 = vmatpush1.msra.mxu0 0.0
    %1405 = vmatprep.subr.mxu0 0.0
    %1406 = vmatpush1.msra.mxu0 0.0
    %1407 = vmatprep.subr.mxu0 0.0
    %1408 = vmatpush1.msra.mxu0 0.0
    %1409 = vmatprep.subr.mxu0 0.0
    %1410 = vmatpush1.msra.mxu0 0.0
    %1411 = vmatprep.subr.mxu0 0.0
    %1412 = vmatpush1.msra.mxu0 0.0
    %1413 = vmatprep.subr.mxu0 0.0
    %1414 = vmatpush1.msra.mxu0 0.0
    %1415 = vmatprep.subr.mxu0 0.0
    %1416 = vmatpush1.msra.mxu0 0.0
    %1417 = vmatprep.subr.mxu0 0.0
    %1418 = vmatpush1.msra.mxu0 0.0
    %1419 = vmatprep.subr.mxu0 0.0
    %1420 = vmatpush1.msra.mxu0 0.0
    %1421 = vmatprep.subr.mxu0 0.0
    %1422 = vmatpush1.msra.mxu0 0.0
    %1423 = vmatprep.subr.mxu0 0.0
    %1424 = vmatpush1.msra.mxu0 0.0
    %1425 = vmatprep.subr.mxu0 0.0
    %1426 = vmatpush1.msra.mxu0 0.0
    %1427 = vmatprep.subr.mxu0 0.0
    %1428 = vmatpush1.msra.mxu0 0.0
    %1429 = vmatprep.subr.mxu0 0.0
    %1430 = vmatpush1.msra.mxu0 0.0
    %1431 = vmatprep.subr.mxu0 0.0
    %1432 = vmatpush1.msra.mxu0 0.0
    %1433 = vmatprep.subr.mxu0 0.0
    %1434 = vmatpush1.msra.mxu0 0.0
    %1435 = vmatprep.subr.mxu0 0.0
    %1436 = vmatpush1.msra.mxu0 0.0
    %1437 = vmatprep.subr.mxu0 0.0
    %1438 = vmatpush1.msra.mxu0 0.0
    %1439 = vmatprep.subr.mxu0 0.0
    %1440 = vmatpush1.msra.mxu0 0.0
    %1441 = vmatprep.subr.mxu0 0.0
    %1442 = vmatpush1.msra.mxu0 0.0
    %1443 = vmatprep.subr.mxu0 0.0
    %1444 = vmatpush1.msra.mxu0 0.0
    %1445 = vmatprep.subr.mxu0 0.0
    %1446 = vmatpush1.msra.mxu0 0.0
    %1447 = vmatprep.subr.mxu0 0.0
    %1448 = vmatpush1.msra.mxu0 0.0
    %1449 = vmatprep.subr.mxu0 0.0
    %1450 = vmatpush1.msra.mxu0 0.0
    %1451 = vmatprep.subr.mxu0 0.0
    %1452 = vmatpush1.msra.mxu0 0.0
    %1453 = vmatprep.subr.mxu0 0.0
    %1454 = vmatpush1.msra.mxu0 0.0
    %1455 = vmatprep.mubr.f32.mxu0 0.0
    %1456 = vmatmul.mubr.f32.gmra.mrb[0].mxu0 %v372
    %v1457 = vpop.f32.mrb[0].mxu0
    %v1458 = vadd.f32 0.0, %v1457
    %v1459 = vpop.f32.mrb[0].mxu0
    %1460 = vmatprep.mubr.f32.mxu0 0.0
    %1461 = vmatmul.mubr.f32.gmra.mrb[0].mxu0 %v375
    %v1462 = vpop.f32.mrb[0].mxu0
    %v1463 = vadd.f32 0.0, %v1462
    %v1464 = vpop.f32.mrb[0].mxu0
    %1465 = vmatprep.mubr.f32.mxu0 0.0
    %1466 = vmatmul.mubr.f32.gmra.mrb[0].mxu0 %v378
    %v1467 = vpop.f32.mrb[0].mxu0
    %v1468 = vadd.f32 0.0, %v1467
    %v1469 = vpop.f32.mrb[0].mxu0
    %1470 = vmatprep.mubr.f32.mxu0 0.0
    %1471 = vmatmul.mubr.f32.gmra.mrb[0].mxu0 %v381
    %v1472 = vpop.f32.mrb[0].mxu0
    %v1473 = vadd.f32 0.0, %v1472
    %v1474 = vpop.f32.mrb[0].mxu0
    %1475 = vdwg.mxu0
    %v1476 = vmax.f32 %v1387, %v1458
    %v1477 = vmax.f32 %v1388, %v1463
    %v1478 = vmax.f32 %v1389, %v1468
    %v1479 = vmax.f32 %v1390, %v1473
    %v1480 = vld [vmem:[%s12] sm:$0xff]
    %v1481 = vld [vmem:[%s12 + $0x8] sm:$0xff]
    %v1482 = vld [vmem:[%s12 + $0x10] sm:$0xff]
    %v1483 = vld [vmem:[%s12 + $0x18] sm:$0xff]
    %v1484 = vld [vmem:[%s12 + $0x20] sm:$0xff]
    %v1485 = vld [vmem:[%s12 + $0x28] sm:$0xff]
    %v1486 = vld [vmem:[%s12 + $0x30] sm:$0xff]
    %v1487 = vld [vmem:[%s12 + $0x38] sm:$0xff]
    %v1488 = vld [vmem:[%s12 + $0x40] sm:$0xff]
    %v1489 = vld [vmem:[%s12 + $0x48] sm:$0xff]
    %v1490 = vld [vmem:[%s12 + $0x50] sm:$0xff]
    %v1491 = vld [vmem:[%s12 + $0x58] sm:$0xff]
    %v1492 = vld [vmem:[%s12 + $0x60] sm:$0xff]
    %v1493 = vld [vmem:[%s12 + $0x68] sm:$0xff]
    %v1494 = vld [vmem:[%s12 + $0x70] sm:$0xff]
    %v1495 = vld [vmem:[%s12 + $0x78] sm:$0xff]
    %1496 = vmatprep.subr.mxu0 0.0
    %1497 = vmatpush1.msra.mxu0 %v1480
    %1498 = vmatprep.subr.mxu0 0.0
    %1499 = vmatpush1.msra.mxu0 %v1481
    %1500 = vmatprep.subr.mxu0 0.0
    %1501 = vmatpush1.msra.mxu0 %v1482
    %1502 = vmatprep.subr.mxu0 0.0
    %1503 = vmatpush1.msra.mxu0 %v1483
    %1504 = vmatprep.subr.mxu0 0.0
    %1505 = vmatpush1.msra.mxu0 %v1484
    %1506 = vmatprep.subr.mxu0 0.0
    %1507 = vmatpush1.msra.mxu0 %v1485
    %1508 = vmatprep.subr.mxu0 0.0
    %1509 = vmatpush1.msra.mxu0 %v1486
    %1510 = vmatprep.subr.mxu0 0.0
    %1511 = vmatpush1.msra.mxu0 %v1487
    %1512 = vmatprep.subr.mxu0 0.0
    %1513 = vmatpush1.msra.mxu0 %v1488
    %1514 = vmatprep.subr.mxu0 0.0
    %1515 = vmatpush1.msra.mxu0 %v1489
    %1516 = vmatprep.subr.mxu0 0.0
    %1517 = vmatpush1.msra.mxu0 %v1490
    %1518 = vmatprep.subr.mxu0 0.0
    %1519 = vmatpush1.msra.mxu0 %v1491
    %1520 = vmatprep.subr.mxu0 0.0
    %1521 = vmatpush1.msra.mxu0 %v1492
    %1522 = vmatprep.subr.mxu0 0.0
    %1523 = vmatpush1.msra.mxu0 %v1493
    %1524 = vmatprep.subr.mxu0 0.0
    %1525 = vmatpush1.msra.mxu0 %v1494
    %1526 = vmatprep.subr.mxu0 0.0
    %1527 = vmatpush1.msra.mxu0 %v1495
    %1528 = vmatprep.subr.mxu0 0.0
    %1529 = vmatpush1.msra.mxu0 0.0
    %1530 = vmatprep.subr.mxu0 0.0
    %1531 = vmatpush1.msra.mxu0 0.0
    %1532 = vmatprep.subr.mxu0 0.0
    %1533 = vmatpush1.msra.mxu0 0.0
    %1534 = vmatprep.subr.mxu0 0.0
    %1535 = vmatpush1.msra.mxu0 0.0
    %1536 = vmatprep.subr.mxu0 0.0
    %1537 = vmatpush1.msra.mxu0 0.0
    %1538 = vmatprep.subr.mxu0 0.0
    %1539 = vmatpush1.msra.mxu0 0.0
    %1540 = vmatprep.subr.mxu0 0.0
    %1541 = vmatpush1.msra.mxu0 0.0
    %1542 = vmatprep.subr.mxu0 0.0
    %1543 = vmatpush1.msra.mxu0 0.0
    %1544 = vmatprep.subr.mxu0 0.0
    %1545 = vmatpush1.msra.mxu0 0.0
    %1546 = vmatprep.subr.mxu0 0.0
    %1547 = vmatpush1.msra.mxu0 0.0
    %1548 = vmatprep.subr.mxu0 0.0
    %1549 = vmatpush1.msra.mxu0 0.0
    %1550 = vmatprep.subr.mxu0 0.0
    %1551 = vmatpush1.msra.mxu0 0.0
    %1552 = vmatprep.subr.mxu0 0.0
    %1553 = vmatpush1.msra.mxu0 0.0
    %1554 = vmatprep.subr.mxu0 0.0
    %1555 = vmatpush1.msra.mxu0 0.0
    %1556 = vmatprep.subr.mxu0 0.0
    %1557 = vmatpush1.msra.mxu0 0.0
    %1558 = vmatprep.subr.mxu0 0.0
    %1559 = vmatpush1.msra.mxu0 0.0
    %1560 = vmatprep.mubr.f32.mxu0 0.0
    %1561 = vmatmul.mubr.f32.gmra.mrb[0].mxu0 %v1476
    %v1562 = vpop.f32.mrb[0].mxu0
    %v1563 = vadd.f32 0.0, %v1562
    %v1564 = vpop.f32.mrb[0].mxu0
    %1565 = vmatprep.mubr.f32.mxu0 0.0
    %1566 = vmatmul.mubr.f32.gmra.mrb[0].mxu0 %v1477
    %v1567 = vpop.f32.mrb[0].mxu0
    %v1568 = vadd.f32 0.0, %v1567
    %v1569 = vpop.f32.mrb[0].mxu0
    %1570 = vmatprep.mubr.f32.mxu0 0.0
    %1571 = vmatmul.mubr.f32.gmra.mrb[0].mxu0 %v1478
    %v1572 = vpop.f32.mrb[0].mxu0
    %v1573 = vadd.f32 0.0, %v1572
    %v1574 = vpop.f32.mrb[0].mxu0
    %1575 = vmatprep.mubr.f32.mxu0 0.0
    %1576 = vmatmul.mubr.f32.gmra.mrb[0].mxu0 %v1479
    %v1577 = vpop.f32.mrb[0].mxu0
    %v1578 = vadd.f32 0.0, %v1577
    %v1579 = vpop.f32.mrb[0].mxu0
    %1580 = vdwg.mxu0
    %v1581 = vmax.f32 %v1476, %v1563
    %v1582 = vmax.f32 %v1477, %v1568
    %v1583 = vmax.f32 %v1478, %v1573
    %v1584 = vmax.f32 %v1479, %v1578
    %v1585 = vld [vmem:[%s13] sm:$0x3]
    %v1587 = vsel %vm61, %v1585, 0
    %1589 = vmatprep.subr.mxu0 0.0
    %1590 = vmatpush1.msra.mxu0 %v1581
    %1591 = vmatprep.subr.mxu0 0.0
    %1592 = vmatpush1.msra.mxu0 %v1582
    %1593 = vmatprep.subr.mxu0 0.0
    %1594 = vmatpush1.msra.mxu0 %v1583
    %1595 = vmatprep.subr.mxu0 0.0
    %1596 = vmatpush1.msra.mxu0 %v1584
    %1597 = vmatprep.subr.mxu0 0.0
    %1598 = vmatpush1.msra.mxu0 0.0
    %1599 = vmatprep.subr.mxu0 0.0
    %1600 = vmatpush1.msra.mxu0 0.0
    %1601 = vmatprep.subr.mxu0 0.0
    %1602 = vmatpush1.msra.mxu0 0.0
    %1603 = vmatprep.subr.mxu0 0.0
    %1604 = vmatpush1.msra.mxu0 0.0
    %1605 = vmatprep.subr.mxu0 0.0
    %1606 = vmatpush1.msra.mxu0 0.0
    %1607 = vmatprep.subr.mxu0 0.0
    %1608 = vmatpush1.msra.mxu0 0.0
    %1609 = vmatprep.subr.mxu0 0.0
    %1610 = vmatpush1.msra.mxu0 0.0
    %1611 = vmatprep.subr.mxu0 0.0
    %1612 = vmatpush1.msra.mxu0 0.0
    %1613 = vmatprep.subr.mxu0 0.0
    %1614 = vmatpush1.msra.mxu0 0.0
    %1615 = vmatprep.subr.mxu0 0.0
    %1616 = vmatpush1.msra.mxu0 0.0
    %1617 = vmatprep.subr.mxu0 0.0
    %1618 = vmatpush1.msra.mxu0 0.0
    %1619 = vmatprep.subr.mxu0 0.0
    %1620 = vmatpush1.msra.mxu0 0.0
    %1621 = vmatprep.subr.mxu0 0.0
    %1622 = vmatpush1.msra.mxu0 0.0
    %1623 = vmatprep.subr.mxu0 0.0
    %1624 = vmatpush1.msra.mxu0 0.0
    %1625 = vmatprep.subr.mxu0 0.0
    %1626 = vmatpush1.msra.mxu0 0.0
    %1627 = vmatprep.subr.mxu0 0.0
    %1628 = vmatpush1.msra.mxu0 0.0
    %1629 = vmatprep.subr.mxu0 0.0
    %1630 = vmatpush1.msra.mxu0 0.0
    %1631 = vmatprep.subr.mxu0 0.0
    %1632 = vmatpush1.msra.mxu0 0.0
    %1633 = vmatprep.subr.mxu0 0.0
    %1634 = vmatpush1.msra.mxu0 0.0
    %1635 = vmatprep.subr.mxu0 0.0
    %1636 = vmatpush1.msra.mxu0 0.0
    %1637 = vmatprep.subr.mxu0 0.0
    %1638 = vmatpush1.msra.mxu0 0.0
    %1639 = vmatprep.subr.mxu0 0.0
    %1640 = vmatpush1.msra.mxu0 0.0
    %1641 = vmatprep.subr.mxu0 0.0
    %1642 = vmatpush1.msra.mxu0 0.0
    %1643 = vmatprep.subr.mxu0 0.0
    %1644 = vmatpush1.msra.mxu0 0.0
    %1645 = vmatprep.subr.mxu0 0.0
    %1646 = vmatpush1.msra.mxu0 0.0
    %1647 = vmatprep.subr.mxu0 0.0
    %1648 = vmatpush1.msra.mxu0 0.0
    %1649 = vmatprep.subr.mxu0 0.0
    %1650 = vmatpush1.msra.mxu0 0.0
    %1651 = vmatprep.subr.mxu0 0.0
    %1652 = vmatpush1.msra.mxu0 0.0
    %1653 = vmatprep.mubr.f32.mxu0 0.0
    %1654 = vmatmul.mubr.f32.gmra.mrb[0].mxu0 %v1587
    %v1655 = vpop.f32.mrb[0].mxu0
    %v1656 = vadd.f32 0.0, %v1655
    %v1657 = vpop.f32.mrb[0].mxu0
    %1658 = vdwg.mxu0
    %v1659 = vld [vmem:[%s8] sm:$0xff]
    %v1660 = vld [vmem:[%s8 + $0x8] sm:$0xff]
    %v1661 = vld [vmem:[%s8 + $0x10] sm:$0xff]
    %v1662 = vld [vmem:[%s8 + $0x18] sm:$0xff]
    %v1663 = vld [vmem:[%s8 + $0x20] sm:$0xff]
    %v1664 = vld [vmem:[%s8 + $0x28] sm:$0xff]
    %v1665 = vld [vmem:[%s8 + $0x30] sm:$0xff]
    %v1666 = vld [vmem:[%s8 + $0x38] sm:$0xff]
    %v1667 = vld [vmem:[%s8 + $0x40] sm:$0xff]
    %v1668 = vld [vmem:[%s8 + $0x48] sm:$0xff]
    %v1669 = vld [vmem:[%s8 + $0x50] sm:$0xff]
    %v1670 = vld [vmem:[%s8 + $0x58] sm:$0xff]
    %v1671 = vld [vmem:[%s8 + $0x60] sm:$0xff]
    %v1672 = vld [vmem:[%s8 + $0x68] sm:$0xff]
    %v1673 = vld [vmem:[%s8 + $0x70] sm:$0xff]
    %v1674 = vld [vmem:[%s8 + $0x78] sm:$0xff]
    %v1675 = vld [vmem:[%s9] sm:$0x1]
    %v1677 = vlaneseq
    %v1678 = vshrl.u32 %v1677, 7
    %v1679 = vsub.s32 0, %v1678
    %v1680 = vrot.slane %v1675, %v1679
    %1682 = vmatprep.subr.mxu0 0.0
    %1683 = vmatpush1.msra.mxu0 %v1659
    %1684 = vmatprep.subr.mxu0 0.0
    %1685 = vmatpush1.msra.mxu0 %v1660
    %1686 = vmatprep.subr.mxu0 0.0
    %1687 = vmatpush1.msra.mxu0 %v1661
    %1688 = vmatprep.subr.mxu0 0.0
    %1689 = vmatpush1.msra.mxu0 %v1662
    %1690 = vmatprep.subr.mxu0 0.0
    %1691 = vmatpush1.msra.mxu0 %v1663
    %1692 = vmatprep.subr.mxu0 0.0
    %1693 = vmatpush1.msra.mxu0 %v1664
    %1694 = vmatprep.subr.mxu0 0.0
    %1695 = vmatpush1.msra.mxu0 %v1665
    %1696 = vmatprep.subr.mxu0 0.0
    %1697 = vmatpush1.msra.mxu0 %v1666
    %1698 = vmatprep.subr.mxu0 0.0
    %1699 = vmatpush1.msra.mxu0 %v1667
    %1700 = vmatprep.subr.mxu0 0.0
    %1701 = vmatpush1.msra.mxu0 %v1668
    %1702 = vmatprep.subr.mxu0 0.0
    %1703 = vmatpush1.msra.mxu0 %v1669
    %1704 = vmatprep.subr.mxu0 0.0
    %1705 = vmatpush1.msra.mxu0 %v1670
    %1706 = vmatprep.subr.mxu0 0.0
    %1707 = vmatpush1.msra.mxu0 %v1671
    %1708 = vmatprep.subr.mxu0 0.0
    %1709 = vmatpush1.msra.mxu0 %v1672
    %1710 = vmatprep.subr.mxu0 0.0
    %1711 = vmatpush1.msra.mxu0 %v1673
    %1712 = vmatprep.subr.mxu0 0.0
    %1713 = vmatpush1.msra.mxu0 %v1674
    %1714 = vmatprep.subr.mxu0 0.0
    %1715 = vmatpush1.msra.mxu0 0.0
    %1716 = vmatprep.subr.mxu0 0.0
    %1717 = vmatpush1.msra.mxu0 0.0
    %1718 = vmatprep.subr.mxu0 0.0
    %1719 = vmatpush1.msra.mxu0 0.0
    %1720 = vmatprep.subr.mxu0 0.0
    %1721 = vmatpush1.msra.mxu0 0.0
    %1722 = vmatprep.subr.mxu0 0.0
    %1723 = vmatpush1.msra.mxu0 0.0
    %1724 = vmatprep.subr.mxu0 0.0
    %1725 = vmatpush1.msra.mxu0 0.0
    %1726 = vmatprep.subr.mxu0 0.0
    %1727 = vmatpush1.msra.mxu0 0.0
    %1728 = vmatprep.subr.mxu0 0.0
    %1729 = vmatpush1.msra.mxu0 0.0
    %1730 = vmatprep.subr.mxu0 0.0
    %1731 = vmatpush1.msra.mxu0 0.0
    %1732 = vmatprep.subr.mxu0 0.0
    %1733 = vmatpush1.msra.mxu0 0.0
    %1734 = vmatprep.subr.mxu0 0.0
    %1735 = vmatpush1.msra.mxu0 0.0
    %1736 = vmatprep.subr.mxu0 0.0
    %1737 = vmatpush1.msra.mxu0 0.0
    %1738 = vmatprep.subr.mxu0 0.0
    %1739 = vmatpush1.msra.mxu0 0.0
    %1740 = vmatprep.subr.mxu0 0.0
    %1741 = vmatpush1.msra.mxu0 0.0
    %1742 = vmatprep.subr.mxu0 0.0
    %1743 = vmatpush1.msra.mxu0 0.0
    %1744 = vmatprep.subr.mxu0 0.0
    %1745 = vmatpush1.msra.mxu0 0.0
    %1746 = vmatprep.mubr.f32.mxu0 0.0
    %1747 = vmatmul.mubr.f32.gmra.mrb[0].mxu0 %v1656
    %v1748 = vpop.f32.mrb[0].mxu0
    %v1749 = vadd.f32 %v1680, %v1748
    %v1750 = vpop.f32.mrb[0].mxu0
    %1751 = vdwg.mxu0
    %vm1752 = vcmask 74752
    %1753 = vst.msk [vmem:[#allocation2] sm:$0x3] %vm1752, %v1749
    // Predicated region
    $region58: #{convnet_forward.1} parent=1 // pred_check
      _
    $region59: #{convnet_forward.1} parent=1 // pred_check_branch
      %1755 = sbr.rel (0) target = $region61
    $region60: #{convnet_forward.1} parent=1 // pred_region
      %s1757 = ssub.s32 32, 32
      %1758 = vsyncadd [#allocation3], %s1757
      %s1760 = sshll.u32 [#allocation2], 4
      %s1761 = int_to_ptr.vmem [resolvable:$true] %s1760
      %1763 = dma.vmem_to_hbm [thread:$0]  %s1761, 32, %s14, [#allocation3]
    $region61: #{convnet_forward.1} parent=1 // pred_fallthru
      _
    // Predicated region
    $region62: #{convnet_forward.1} parent=1 // pred_check
      _
    $region63: #{convnet_forward.1} parent=1 // pred_check_branch
      %1765 = sbr.rel (0) target = $region65
    $region64: #{convnet_forward.1} parent=1 // pred_region
      %1766 = dma.done [#allocation3], 32
    $region65: #{convnet_forward.1} parent=1 // pred_fallthru
      _
    %1767 = vsyncpa [#allocation3], 1

</llo_original>
